<compile_context>
chip_gen: v6e
topology: v6e:2x2x1
jax: 0.10.0
libtpu: 0.0.40
codegen_flags: <defaults>
</compile_context>

<pallas_src>
import functools

import jax
import jax.numpy as jnp
from jax.experimental import pallas as pl
from jax.experimental.pallas import tpu as pltpu

IN_DIM = 5000
H1 = 128
H2 = 64
OUT_DIM = 2
OUT_PAD = 128   # lane-dense output width (zero-padded, sliced off on host)


def _round_up(n, m):
    return ((n + m - 1) // m) * m


def mlp_kernel(x_ref, w1_ref, b1_ref, w2_ref, b2_ref, w3_ref, b3_ref, o_ref):
    # fc1: the only big matmul (K = 5000).  x arrives as f32 straight from HBM
    # (no staging copy); cast to bf16 on-chip so the MXU runs at full rate.
    # Accumulation is f32 via preferred_element_type.
    x = x_ref[...].astype(jnp.bfloat16)
    w1 = w1_ref[...].astype(jnp.bfloat16)
    h1 = jnp.dot(x, w1, preferred_element_type=jnp.float32)
    h1 = jnp.maximum(h1 + b1_ref[...], 0.0)
    # fc2 / fc3 are tiny (K = 128 / 64): keep them in f32 — they hide entirely
    # under the x DMA on all generations and retain full precision.
    h2 = jnp.dot(h1, w2_ref[...], preferred_element_type=jnp.float32)
    h2 = jnp.maximum(h2 + b2_ref[...], 0.0)
    out = jnp.dot(h2, w3_ref[...], preferred_element_type=jnp.float32) + b3_ref[...]
    o_ref[...] = out.astype(o_ref.dtype)


@functools.partial(jax.jit, static_argnames=("tile_b",))
def mlp_forward(x, w1, b1, w2, b2, w3, b3, *, tile_b=512):
    """x: [B, 5000] f32; weights stored as [in, out] f32, biases as [1, out] f32."""
    B = x.shape[0]

    # Only micro-batches (<8 rows) get padded; normal batches go straight in
    # (ragged last grid step is handled by Pallas OOB masking — rows are
    # independent, so garbage padding rows never contaminate valid rows).
    xk = x if B >= 8 else jnp.pad(x, ((0, 8 - B), (0, 0)))
    Bp = xk.shape[0]

    tb_cap = (Bp // 8) * 8                       # largest legal tile <= Bp
    tb = min(_round_up(min(tile_b, Bp), 8), tb_cap)
    # v7x megacore: guarantee >= 2 grid steps whenever the batch allows, so the
    # "parallel" batch axis can shard across both TensorCores.
    if pl.cdiv(Bp, tb) < 2 and Bp >= 16:
        tb = min(_round_up(pl.cdiv(Bp, 2), 8), tb_cap)
    grid = (pl.cdiv(Bp, tb),)

    # Lane-dense output: zero-pad fc3's 2 output features to 128 lanes.
    # (w3/b3 are tiny — 32 KB — so this per-call pad is negligible.)
    w3p = jnp.zeros((H2, OUT_PAD), w3.dtype).at[:, :OUT_DIM].set(w3)
    b3p = jnp.zeros((1, OUT_PAD), b3.dtype).at[:, :OUT_DIM].set(b3)

    full2d = lambda a: pl.BlockSpec(a.shape, lambda i: (0, 0))  # resident block

    cost = pl.CostEstimate(
        flops=2 * Bp * (IN_DIM * H1 + H1 * H2 + H2 * OUT_PAD),
        transcendentals=0,
        bytes_accessed=(xk.size + w1.size + b1.size + w2.size + b2.size
                        + w3p.size + b3p.size + Bp * OUT_PAD) * 4,
    )

    out = pl.pallas_call(
        mlp_kernel,
        out_shape=jax.ShapeDtypeStruct((Bp, OUT_PAD), jnp.float32),
        grid_spec=pltpu.PrefetchScalarGridSpec(
            num_scalar_prefetch=0,
            grid=grid,
            in_specs=[
                pl.BlockSpec((tb, IN_DIM), lambda i: (i, 0)),   # x streamed over batch
                full2d(w1), full2d(b1),                          # weights/biases resident
                full2d(w2), full2d(b2),
                full2d(w3p), full2d(b3p),
            ],
            out_specs=pl.BlockSpec((tb, OUT_PAD), lambda i: (i, 0)),
        ),
        compiler_params=pltpu.CompilerParams(
            dimension_semantics=("parallel",),          # shards batch across TCs (v7x)
            vmem_limit_bytes=48 * 1024 * 1024,          # safe on v7x (64 MiB), roomy on v5e/v6e
        ),
        cost_estimate=cost,
    )(xk, w1, b1, w2, b2, w3p, b3p)
    return out[:B, :OUT_DIM]


def init_params(key):
    """Deterministic init mirroring nn.Linear defaults (U(-1/sqrt(fan_in), +1/sqrt(fan_in)))."""
    def linear(k, fan_in, fan_out):
        kw, kb = jax.random.split(k)
        bound = 1.0 / jnp.sqrt(fan_in)
        # Stored as [in, out] so the kernel does x @ W (== PyTorch x @ W.T with W[out, in]).
        w = jax.random.uniform(kw, (fan_in, fan_out), jnp.float32, -bound, bound)
        b = jax.random.uniform(kb, (1, fan_out), jnp.float32, -bound, bound)
        return w, b

    k1, k2, k3 = jax.random.split(key, 3)
    w1, b1 = linear(k1, IN_DIM, H1)
    w2, b2 = linear(k2, H1, H2)
    w3, b3 = linear(k3, H2, OUT_DIM)
    return w1, b1, w2, b2, w3, b3


def mlp_reference_matched(x, w1, b1, w2, b2, w3, b3):
    # Same dtype strategy as the kernel: bf16 operands for fc1 (f32 accum), f32 rest.
    h1 = jnp.maximum(
        jnp.dot(x.astype(jnp.bfloat16), w1.astype(jnp.bfloat16),
                preferred_element_type=jnp.float32) + b1, 0.0)
    h2 = jnp.maximum(jnp.dot(h1, w2, preferred_element_type=jnp.float32) + b2, 0.0)
    return jnp.dot(h2, w3, preferred_element_type=jnp.float32) + b3


def mlp_reference_f32(x, w1, b1, w2, b2, w3, b3):
    h1 = jnp.maximum(x @ w1 + b1, 0.0)
    h2 = jnp.maximum(h1 @ w2 + b2, 0.0)
    return h2 @ w3 + b3


if __name__ == "__main__":
    key = jax.random.PRNGKey(0)
    kx, kp = jax.random.split(key)

    batch = 4  # small demo batch; wrapper handles any batch size
    x = jax.random.normal(kx, (batch, IN_DIM), jnp.float32)
    params = init_params(kp)

    out = jax.block_until_ready(mlp_forward(x, *params))
    assert out.shape == (batch, OUT_DIM), out.shape

    # Tight check vs. a reference using the exact same dtype strategy.
    ref_matched = mlp_reference_matched(x, *params)
    assert jnp.allclose(out, ref_matched, atol=2e-3, rtol=2e-3), \
        "mismatch vs dtype-matched reference"

    # Loose check vs. the pure-f32 PyTorch-equivalent forward (fc1 bf16 rounding only).
    ref_f32 = mlp_reference_f32(x, *params)
    assert jnp.allclose(out, ref_f32, atol=5e-2, rtol=5e-2), "mismatch vs f32 reference"

    print("KERNEL_OK")
</pallas_src>

<mosaic_0001>
module attributes {stable_mosaic.version = 11 : i64} {
  func.func @mlp_kernel(%arg0: i32, %arg1: memref<8x5000xf32, #tpu.memory_space<vmem>>, %arg2: memref<5000x128xf32, #tpu.memory_space<vmem>>, %arg3: memref<1x128xf32, #tpu.memory_space<vmem>>, %arg4: memref<128x64xf32, #tpu.memory_space<vmem>>, %arg5: memref<1x64xf32, #tpu.memory_space<vmem>>, %arg6: memref<64x128xf32, #tpu.memory_space<vmem>>, %arg7: memref<1x128xf32, #tpu.memory_space<vmem>>, %arg8: memref<8x128xf32, #tpu.memory_space<vmem>>) attributes {dimension_semantics = [#tpu.dimension_semantics<parallel>], iteration_bounds = array<i64: 1>, scalar_prefetch = 0 : i64, scratch_operands = 0 : i64, tpu.core_type = #tpu.core_type<tc>, window_params = [{transform_indices = @transform_0, window_bounds = array<i64: 8, 5000>}, {pipeline_mode = #tpu.pipeline_mode<synchronous>, transform_indices = @transform_1, window_bounds = array<i64: 5000, 128>}, {pipeline_mode = #tpu.pipeline_mode<synchronous>, transform_indices = @transform_2, window_bounds = array<i64: 1, 128>}, {pipeline_mode = #tpu.pipeline_mode<synchronous>, transform_indices = @transform_3, window_bounds = array<i64: 128, 64>}, {pipeline_mode = #tpu.pipeline_mode<synchronous>, transform_indices = @transform_4, window_bounds = array<i64: 1, 64>}, {pipeline_mode = #tpu.pipeline_mode<synchronous>, transform_indices = @transform_5, window_bounds = array<i64: 64, 128>}, {pipeline_mode = #tpu.pipeline_mode<synchronous>, transform_indices = @transform_6, window_bounds = array<i64: 1, 128>}, {transform_indices = @transform_7, window_bounds = array<i64: 8, 128>}]} {
    %c0 = arith.constant 0 : index
    %c0_0 = arith.constant 0 : index
    %0 = vector.load %arg1[%c0, %c0_0] : memref<8x5000xf32, #tpu.memory_space<vmem>>, vector<8x5000xf32>
    %1 = arith.truncf %0 : vector<8x5000xf32> to vector<8x5000xbf16>
    %c0_1 = arith.constant 0 : index
    %c0_2 = arith.constant 0 : index
    %2 = vector.load %arg2[%c0_1, %c0_2] : memref<5000x128xf32, #tpu.memory_space<vmem>>, vector<5000x128xf32>
    %3 = arith.truncf %2 : vector<5000x128xf32> to vector<5000x128xbf16>
    %cst = arith.constant dense<0.000000e+00> : vector<8x128xf32>
    %4 = tpu.matmul %1, %3, %cst {dimension_numbers = #tpu.dot_dimension_numbers<[1], [0], [0], [1], [0, 0, 1, 1], [], []>} : vector<8x5000xbf16>, vector<5000x128xbf16>, vector<8x128xf32> -> vector<8x128xf32>
    %c0_3 = arith.constant 0 : index
    %c0_4 = arith.constant 0 : index
    %5 = vector.load %arg3[%c0_3, %c0_4] : memref<1x128xf32, #tpu.memory_space<vmem>>, vector<1x128xf32>
    %6 = vector.broadcast %5 : vector<1x128xf32> to vector<8x128xf32>
    %7 = arith.addf %4, %6 : vector<8x128xf32>
    %cst_5 = arith.constant 0.000000e+00 : f32
    %8 = vector.broadcast %cst_5 : f32 to vector<8x128xf32>
    %9 = arith.maximumf %7, %8 : vector<8x128xf32>
    %c0_6 = arith.constant 0 : index
    %c0_7 = arith.constant 0 : index
    %10 = vector.load %arg4[%c0_6, %c0_7] : memref<128x64xf32, #tpu.memory_space<vmem>>, vector<128x64xf32>
    %cst_8 = arith.constant dense<0.000000e+00> : vector<8x64xf32>
    %11 = tpu.matmul %9, %10, %cst_8 {dimension_numbers = #tpu.dot_dimension_numbers<[1], [0], [0], [1], [0, 0, 1, 1], [], []>} : vector<8x128xf32>, vector<128x64xf32>, vector<8x64xf32> -> vector<8x64xf32>
    %c0_9 = arith.constant 0 : index
    %c0_10 = arith.constant 0 : index
    %12 = vector.load %arg5[%c0_9, %c0_10] : memref<1x64xf32, #tpu.memory_space<vmem>>, vector<1x64xf32>
    %13 = vector.broadcast %12 : vector<1x64xf32> to vector<8x64xf32>
    %14 = arith.addf %11, %13 : vector<8x64xf32>
    %cst_11 = arith.constant 0.000000e+00 : f32
    %15 = vector.broadcast %cst_11 : f32 to vector<8x64xf32>
    %16 = arith.maximumf %14, %15 : vector<8x64xf32>
    %c0_12 = arith.constant 0 : index
    %c0_13 = arith.constant 0 : index
    %17 = vector.load %arg6[%c0_12, %c0_13] : memref<64x128xf32, #tpu.memory_space<vmem>>, vector<64x128xf32>
    %cst_14 = arith.constant dense<0.000000e+00> : vector<8x128xf32>
    %18 = tpu.matmul %16, %17, %cst_14 {dimension_numbers = #tpu.dot_dimension_numbers<[1], [0], [0], [1], [0, 0, 1, 1], [], []>} : vector<8x64xf32>, vector<64x128xf32>, vector<8x128xf32> -> vector<8x128xf32>
    %c0_15 = arith.constant 0 : index
    %c0_16 = arith.constant 0 : index
    %19 = vector.load %arg7[%c0_15, %c0_16] : memref<1x128xf32, #tpu.memory_space<vmem>>, vector<1x128xf32>
    %20 = vector.broadcast %19 : vector<1x128xf32> to vector<8x128xf32>
    %21 = arith.addf %18, %20 : vector<8x128xf32>
    %c0_17 = arith.constant 0 : index
    %c0_18 = arith.constant 0 : index
    %22 = vector.load %arg8[%c0_17, %c0_18] : memref<8x128xf32, #tpu.memory_space<vmem>>, vector<8x128xf32>
    tpu.vector_store %arg8[%c0_17, %c0_18], %21 {strides = array<i32>} : memref<8x128xf32, #tpu.memory_space<vmem>>, vector<8x128xf32>,
    return
  }
  func.func @transform_0(%arg0: i32) -> (i32, i32) {
    %c0_i32 = arith.constant 0 : i32
    %c0_i32_0 = arith.constant 0 : i32
    return %arg0, %c0_i32 : i32, i32
  }
  func.func @transform_1(%arg0: i32) -> (i32, i32) {
    %c0_i32 = arith.constant 0 : i32
    %c0_i32_0 = arith.constant 0 : i32
    %c0_i32_1 = arith.constant 0 : i32
    return %c0_i32, %c0_i32_0 : i32, i32
  }
  func.func @transform_2(%arg0: i32) -> (i32, i32) {
    %c0_i32 = arith.constant 0 : i32
    %c0_i32_0 = arith.constant 0 : i32
    %c0_i32_1 = arith.constant 0 : i32
    return %c0_i32, %c0_i32_0 : i32, i32
  }
  func.func @transform_3(%arg0: i32) -> (i32, i32) {
    %c0_i32 = arith.constant 0 : i32
    %c0_i32_0 = arith.constant 0 : i32
    %c0_i32_1 = arith.constant 0 : i32
    return %c0_i32, %c0_i32_0 : i32, i32
  }
  func.func @transform_4(%arg0: i32) -> (i32, i32) {
    %c0_i32 = arith.constant 0 : i32
    %c0_i32_0 = arith.constant 0 : i32
    %c0_i32_1 = arith.constant 0 : i32
    return %c0_i32, %c0_i32_0 : i32, i32
  }
  func.func @transform_5(%arg0: i32) -> (i32, i32) {
    %c0_i32 = arith.constant 0 : i32
    %c0_i32_0 = arith.constant 0 : i32
    %c0_i32_1 = arith.constant 0 : i32
    return %c0_i32, %c0_i32_0 : i32, i32
  }
  func.func @transform_6(%arg0: i32) -> (i32, i32) {
    %c0_i32 = arith.constant 0 : i32
    %c0_i32_0 = arith.constant 0 : i32
    %c0_i32_1 = arith.constant 0 : i32
    return %c0_i32, %c0_i32_0 : i32, i32
  }
  func.func @transform_7(%arg0: i32) -> (i32, i32) {
    %c0_i32 = arith.constant 0 : i32
    %c0_i32_0 = arith.constant 0 : i32
    return %arg0, %c0_i32 : i32, i32
  }
}

</mosaic_0001>

<llo_original>
// kernel: mlp_forward.1
$region0: #{mlp_forward.1}
  #allocation0 [shape = 'u32[]', space=smem, size = 0x4, offset = 0x4, fixed_abs, tag = 'smem constant byte address 0x4 - core index']
  #allocation1 [shape = 'u32[144,128]{1,0:T(1,128)}', space=vmem, size = 0x12000, scoped, tag = 'internal scratch']
  %s0 = inlined_call_operand.vmem [shape: f32[8,5000], index: 0, kind: input, shape index: {}]
  %s1 = inlined_call_operand.hbm [shape: f32[5000,128], index: 1, kind: input, shape index: {}]
  %s2 = inlined_call_operand.hbm [shape: f32[1,128], index: 2, kind: input, shape index: {}]
  %s3 = inlined_call_operand.vmem [shape: f32[128,64], index: 3, kind: input, shape index: {}]
  %s4 = inlined_call_operand.hbm [shape: f32[1,64], index: 4, kind: input, shape index: {}]
  %s5 = inlined_call_operand.vmem [shape: f32[64,128], index: 5, kind: input, shape index: {}]
  %s6 = inlined_call_operand.vmem [shape: f32[1,128], index: 6, kind: input, shape index: {}]
  %s7 = inlined_call_operand.vmem [shape: f32[8,128], index: 7, kind: output, shape index: {}]
  %s8 = sld [smem:[#allocation0]]
  $region50: #{mlp_forward.1} parent=0
    _
  %s10 = ssub.s32 1, %s8
  %s11 = scalar_select 0, %s10, %s8
  $region1: #{mlp_forward.1} parent=0
    #allocation2 [shape = 'u8[2560000]{0}', space=vmem, size = 0x271000, scoped, tag = 'input window, operand 1, single buffered']
    #allocation3 [shape = 's32[1]{0}', space=sflag, size = 0x4, scoped, tag = 'scoped memory for mlp_forward.1']
    #allocation4 [shape = 'u8[512]{0}', space=vmem, size = 0x400, scoped, tag = 'input window, operand 2, single buffered']
    #allocation5 [shape = 's32[1]{0}', space=sflag, size = 0x4, scoped, tag = 'scoped memory for mlp_forward.1']
    #allocation6 [shape = 'u8[512]{0}', space=vmem, size = 0x400, scoped, tag = 'input window, operand 4, single buffered']
    %12 = vsyncpa [#allocation3], 0
    %13 = vsyncpa [#allocation5], 0
    // Predicated region
    $region2: #{mlp_forward.1} parent=1 // pred_check
      _
    $region3: #{mlp_forward.1} parent=1 // pred_check_branch
      %15 = sbr.rel (0) target = $region5
    $region4: #{mlp_forward.1} parent=1 // pred_region
      _
    $region5: #{mlp_forward.1} parent=1 // pred_fallthru
      _
    // Predicated region
    $region6: #{mlp_forward.1} parent=1 // pred_check
      _
    $region7: #{mlp_forward.1} parent=1 // pred_check_branch
      %17 = sbr.rel (0) target = $region9
    $region8: #{mlp_forward.1} parent=1 // pred_region
      %s19 = ssub.s32 80000, 80000
      %20 = vsyncadd [#allocation3], %s19
      %s21 = sshll.u32 [#allocation2], 4
      %s22 = int_to_ptr.vmem [resolvable:$true] %s21
      %27 = dma.hbm_to_vmem [thread:$0]  %s1, 80000, %s22, [#allocation3], 128, 128, 8
    $region9: #{mlp_forward.1} parent=1 // pred_fallthru
      _
    // Predicated region
    $region10: #{mlp_forward.1} parent=1 // pred_check
      _
    $region11: #{mlp_forward.1} parent=1 // pred_check_branch
      %29 = sbr.rel (0) target = $region13
    $region12: #{mlp_forward.1} parent=1 // pred_region
      %s31 = ssub.s32 16, 16
      %32 = vsyncadd [#allocation5], %s31
      %s34 = sshll.u32 [#allocation4], 4
      %s35 = int_to_ptr.vmem [resolvable:$true] %s34
      %37 = dma.hbm_to_vmem [thread:$0]  %s2, 16, %s35, [#allocation5]
    $region13: #{mlp_forward.1} parent=1 // pred_fallthru
      _
    // Predicated region
    $region14: #{mlp_forward.1} parent=1 // pred_check
      _
    $region15: #{mlp_forward.1} parent=1 // pred_check_branch
      %39 = sbr.rel (0) target = $region17
    $region16: #{mlp_forward.1} parent=1 // pred_region
      _
    $region17: #{mlp_forward.1} parent=1 // pred_fallthru
      _
    // Predicated region
    $region18: #{mlp_forward.1} parent=1 // pred_check
      _
    $region19: #{mlp_forward.1} parent=1 // pred_check_branch
      %41 = sbr.rel (0) target = $region21
    $region20: #{mlp_forward.1} parent=1 // pred_region
      %s43 = ssub.s32 16, 16
      %44 = vsyncadd [#allocation5], %s43
      %s46 = sshll.u32 [#allocation6], 4
      %s47 = int_to_ptr.vmem [resolvable:$true] %s46
      %49 = dma.hbm_to_vmem [thread:$0]  %s4, 16, %s47, [#allocation5]
    $region21: #{mlp_forward.1} parent=1 // pred_fallthru
      _
    // Predicated region
    $region22: #{mlp_forward.1} parent=1 // pred_check
      _
    $region23: #{mlp_forward.1} parent=1 // pred_check_branch
      %51 = sbr.rel (0) target = $region25
    $region24: #{mlp_forward.1} parent=1 // pred_region
      _
    $region25: #{mlp_forward.1} parent=1 // pred_fallthru
      _
    // Predicated region
    $region26: #{mlp_forward.1} parent=1 // pred_check
      _
    $region27: #{mlp_forward.1} parent=1 // pred_check_branch
      %53 = sbr.rel (0) target = $region29
    $region28: #{mlp_forward.1} parent=1 // pred_region
      _
    $region29: #{mlp_forward.1} parent=1 // pred_fallthru
      _
    // Predicated region
    $region30: #{mlp_forward.1} parent=1 // pred_check
      _
    $region31: #{mlp_forward.1} parent=1 // pred_check_branch
      %55 = sbr.rel (0) target = $region33
    $region32: #{mlp_forward.1} parent=1 // pred_region
      %56 = dma.done [#allocation3], 80000
    $region33: #{mlp_forward.1} parent=1 // pred_fallthru
      _
    // Predicated region
    $region34: #{mlp_forward.1} parent=1 // pred_check
      _
    $region35: #{mlp_forward.1} parent=1 // pred_check_branch
      %58 = sbr.rel (0) target = $region37
    $region36: #{mlp_forward.1} parent=1 // pred_region
      %59 = dma.done [#allocation5], 16
    $region37: #{mlp_forward.1} parent=1 // pred_fallthru
      _
    // Predicated region
    $region38: #{mlp_forward.1} parent=1 // pred_check
      _
    $region39: #{mlp_forward.1} parent=1 // pred_check_branch
      %61 = sbr.rel (0) target = $region41
    $region40: #{mlp_forward.1} parent=1 // pred_region
      %62 = dma.done [#allocation5], 16
    $region41: #{mlp_forward.1} parent=1 // pred_fallthru
      _
    %v64 = vld [vmem:[%s0] sm:$0xff]
    %v65 = vld [vmem:[%s0 + $0x8] sm:$0xff]
    %v66 = vld [vmem:[%s0 + $0x10] sm:$0xff]
    %v67 = vld [vmem:[%s0 + $0x18] sm:$0xff]
    %v68 = vld [vmem:[%s0 + $0x20] sm:$0xff]
    %v69 = vld [vmem:[%s0 + $0x28] sm:$0xff]
    %v70 = vld [vmem:[%s0 + $0x30] sm:$0xff]
    %v71 = vld [vmem:[%s0 + $0x38] sm:$0xff]
    %v72 = vld [vmem:[%s0 + $0x40] sm:$0xff]
    %v73 = vld [vmem:[%s0 + $0x48] sm:$0xff]
    %v74 = vld [vmem:[%s0 + $0x50] sm:$0xff]
    %v75 = vld [vmem:[%s0 + $0x58] sm:$0xff]
    %v76 = vld [vmem:[%s0 + $0x60] sm:$0xff]
    %v77 = vld [vmem:[%s0 + $0x68] sm:$0xff]
    %v78 = vld [vmem:[%s0 + $0x70] sm:$0xff]
    %v79 = vld [vmem:[%s0 + $0x78] sm:$0xff]
    %v80 = vld [vmem:[%s0 + $0x80] sm:$0xff]
    %v81 = vld [vmem:[%s0 + $0x88] sm:$0xff]
    %v82 = vld [vmem:[%s0 + $0x90] sm:$0xff]
    %v83 = vld [vmem:[%s0 + $0x98] sm:$0xff]
    %v84 = vld [vmem:[%s0 + $0xa0] sm:$0xff]
    %v85 = vld [vmem:[%s0 + $0xa8] sm:$0xff]
    %v86 = vld [vmem:[%s0 + $0xb0] sm:$0xff]
    %v87 = vld [vmem:[%s0 + $0xb8] sm:$0xff]
    %v88 = vld [vmem:[%s0 + $0xc0] sm:$0xff]
    %v89 = vld [vmem:[%s0 + $0xc8] sm:$0xff]
    %v90 = vld [vmem:[%s0 + $0xd0] sm:$0xff]
    %v91 = vld [vmem:[%s0 + $0xd8] sm:$0xff]
    %v92 = vld [vmem:[%s0 + $0xe0] sm:$0xff]
    %v93 = vld [vmem:[%s0 + $0xe8] sm:$0xff]
    %v94 = vld [vmem:[%s0 + $0xf0] sm:$0xff]
    %v95 = vld [vmem:[%s0 + $0xf8] sm:$0xff]
    %v96 = vld [vmem:[%s0 + $0x100] sm:$0xff]
    %v97 = vld [vmem:[%s0 + $0x108] sm:$0xff]
    %v98 = vld [vmem:[%s0 + $0x110] sm:$0xff]
    %v99 = vld [vmem:[%s0 + $0x118] sm:$0xff]
    %v100 = vld [vmem:[%s0 + $0x120] sm:$0xff]
    %v101 = vld [vmem:[%s0 + $0x128] sm:$0xff]
    %v102 = vld [vmem:[%s0 + $0x130] sm:$0xff]
    %v103 = vld [vmem:[%s0 + $0x138] sm:$0xff]
    %v104 = vpack.c.bf16 %v64, %v64
    %v105 = vpack.c.bf16 %v65, %v65
    %v106 = vpack.c.bf16 %v66, %v66
    %v107 = vpack.c.bf16 %v67, %v67
    %v108 = vpack.c.bf16 %v68, %v68
    %v109 = vpack.c.bf16 %v69, %v69
    %v110 = vpack.c.bf16 %v70, %v70
    %v111 = vpack.c.bf16 %v71, %v71
    %v112 = vpack.c.bf16 %v72, %v72
    %v113 = vpack.c.bf16 %v73, %v73
    %v114 = vpack.c.bf16 %v74, %v74
    %v115 = vpack.c.bf16 %v75, %v75
    %v116 = vpack.c.bf16 %v76, %v76
    %v117 = vpack.c.bf16 %v77, %v77
    %v118 = vpack.c.bf16 %v78, %v78
    %v119 = vpack.c.bf16 %v79, %v79
    %v120 = vpack.c.bf16 %v80, %v80
    %v121 = vpack.c.bf16 %v81, %v81
    %v122 = vpack.c.bf16 %v82, %v82
    %v123 = vpack.c.bf16 %v83, %v83
    %v124 = vpack.c.bf16 %v84, %v84
    %v125 = vpack.c.bf16 %v85, %v85
    %v126 = vpack.c.bf16 %v86, %v86
    %v127 = vpack.c.bf16 %v87, %v87
    %v128 = vpack.c.bf16 %v88, %v88
    %v129 = vpack.c.bf16 %v89, %v89
    %v130 = vpack.c.bf16 %v90, %v90
    %v131 = vpack.c.bf16 %v91, %v91
    %v132 = vpack.c.bf16 %v92, %v92
    %v133 = vpack.c.bf16 %v93, %v93
    %v134 = vpack.c.bf16 %v94, %v94
    %v135 = vpack.c.bf16 %v95, %v95
    %v136 = vpack.c.bf16 %v96, %v96
    %v137 = vpack.c.bf16 %v97, %v97
    %v138 = vpack.c.bf16 %v98, %v98
    %v139 = vpack.c.bf16 %v99, %v99
    %v140 = vpack.c.bf16 %v100, %v100
    %v141 = vpack.c.bf16 %v101, %v101
    %v142 = vpack.c.bf16 %v102, %v102
    %v143 = vpack.c.bf16 %v103, %v103
    %v144 = vld [vmem:[#allocation2] sm:$0xff]
    %v145 = vld [vmem:[#allocation2 + $0x8] sm:$0xff]
    %v146 = vld [vmem:[#allocation2 + $0x10] sm:$0xff]
    %v147 = vld [vmem:[#allocation2 + $0x18] sm:$0xff]
    %v148 = vld [vmem:[#allocation2 + $0x20] sm:$0xff]
    %v149 = vld [vmem:[#allocation2 + $0x28] sm:$0xff]
    %v150 = vld [vmem:[#allocation2 + $0x30] sm:$0xff]
    %v151 = vld [vmem:[#allocation2 + $0x38] sm:$0xff]
    %v152 = vld [vmem:[#allocation2 + $0x40] sm:$0xff]
    %v153 = vld [vmem:[#allocation2 + $0x48] sm:$0xff]
    %v154 = vld [vmem:[#allocation2 + $0x50] sm:$0xff]
    %v155 = vld [vmem:[#allocation2 + $0x58] sm:$0xff]
    %v156 = vld [vmem:[#allocation2 + $0x60] sm:$0xff]
    %v157 = vld [vmem:[#allocation2 + $0x68] sm:$0xff]
    %v158 = vld [vmem:[#allocation2 + $0x70] sm:$0xff]
    %v159 = vld [vmem:[#allocation2 + $0x78] sm:$0xff]
    %v160 = vld [vmem:[#allocation2 + $0x80] sm:$0xff]
    %v161 = vld [vmem:[#allocation2 + $0x88] sm:$0xff]
    %v162 = vld [vmem:[#allocation2 + $0x90] sm:$0xff]
    %v163 = vld [vmem:[#allocation2 + $0x98] sm:$0xff]
    %v164 = vld [vmem:[#allocation2 + $0xa0] sm:$0xff]
    %v165 = vld [vmem:[#allocation2 + $0xa8] sm:$0xff]
    %v166 = vld [vmem:[#allocation2 + $0xb0] sm:$0xff]
    %v167 = vld [vmem:[#allocation2 + $0xb8] sm:$0xff]
    %v168 = vld [vmem:[#allocation2 + $0xc0] sm:$0xff]
    %v169 = vld [vmem:[#allocation2 + $0xc8] sm:$0xff]
    %v170 = vld [vmem:[#allocation2 + $0xd0] sm:$0xff]
    %v171 = vld [vmem:[#allocation2 + $0xd8] sm:$0xff]
    %v172 = vld [vmem:[#allocation2 + $0xe0] sm:$0xff]
    %v173 = vld [vmem:[#allocation2 + $0xe8] sm:$0xff]
    %v174 = vld [vmem:[#allocation2 + $0xf0] sm:$0xff]
    %v175 = vld [vmem:[#allocation2 + $0xf8] sm:$0xff]
    %v176 = vld [vmem:[#allocation2 + $0x100] sm:$0xff]
    %v177 = vld [vmem:[#allocation2 + $0x108] sm:$0xff]
    %v178 = vld [vmem:[#allocation2 + $0x110] sm:$0xff]
    %v179 = vld [vmem:[#allocation2 + $0x118] sm:$0xff]
    %v180 = vld [vmem:[#allocation2 + $0x120] sm:$0xff]
    %v181 = vld [vmem:[#allocation2 + $0x128] sm:$0xff]
    %v182 = vld [vmem:[#allocation2 + $0x130] sm:$0xff]
    %v183 = vld [vmem:[#allocation2 + $0x138] sm:$0xff]
    %v184 = vld [vmem:[#allocation2 + $0x140] sm:$0xff]
    %v185 = vld [vmem:[#allocation2 + $0x148] sm:$0xff]
    %v186 = vld [vmem:[#allocation2 + $0x150] sm:$0xff]
    %v187 = vld [vmem:[#allocation2 + $0x158] sm:$0xff]
    %v188 = vld [vmem:[#allocation2 + $0x160] sm:$0xff]
    %v189 = vld [vmem:[#allocation2 + $0x168] sm:$0xff]
    %v190 = vld [vmem:[#allocation2 + $0x170] sm:$0xff]
    %v191 = vld [vmem:[#allocation2 + $0x178] sm:$0xff]
    %v192 = vld [vmem:[#allocation2 + $0x180] sm:$0xff]
    %v193 = vld [vmem:[#allocation2 + $0x188] sm:$0xff]
    %v194 = vld [vmem:[#allocation2 + $0x190] sm:$0xff]
    %v195 = vld [vmem:[#allocation2 + $0x198] sm:$0xff]
    %v196 = vld [vmem:[#allocation2 + $0x1a0] sm:$0xff]
    %v197 = vld [vmem:[#allocation2 + $0x1a8] sm:$0xff]
    %v198 = vld [vmem:[#allocation2 + $0x1b0] sm:$0xff]
    %v199 = vld [vmem:[#allocation2 + $0x1b8] sm:$0xff]
    %v200 = vld [vmem:[#allocation2 + $0x1c0] sm:$0xff]
    %v201 = vld [vmem:[#allocation2 + $0x1c8] sm:$0xff]
    %v202 = vld [vmem:[#allocation2 + $0x1d0] sm:$0xff]
    %v203 = vld [vmem:[#allocation2 + $0x1d8] sm:$0xff]
    %v204 = vld [vmem:[#allocation2 + $0x1e0] sm:$0xff]
    %v205 = vld [vmem:[#allocation2 + $0x1e8] sm:$0xff]
    %v206 = vld [vmem:[#allocation2 + $0x1f0] sm:$0xff]
    %v207 = vld [vmem:[#allocation2 + $0x1f8] sm:$0xff]
    %v208 = vld [vmem:[#allocation2 + $0x200] sm:$0xff]
    %v209 = vld [vmem:[#allocation2 + $0x208] sm:$0xff]
    %v210 = vld [vmem:[#allocation2 + $0x210] sm:$0xff]
    %v211 = vld [vmem:[#allocation2 + $0x218] sm:$0xff]
    %v212 = vld [vmem:[#allocation2 + $0x220] sm:$0xff]
    %v213 = vld [vmem:[#allocation2 + $0x228] sm:$0xff]
    %v214 = vld [vmem:[#allocation2 + $0x230] sm:$0xff]
    %v215 = vld [vmem:[#allocation2 + $0x238] sm:$0xff]
    %v216 = vld [vmem:[#allocation2 + $0x240] sm:$0xff]
    %v217 = vld [vmem:[#allocation2 + $0x248] sm:$0xff]
    %v218 = vld [vmem:[#allocation2 + $0x250] sm:$0xff]
    %v219 = vld [vmem:[#allocation2 + $0x258] sm:$0xff]
    %v220 = vld [vmem:[#allocation2 + $0x260] sm:$0xff]
    %v221 = vld [vmem:[#allocation2 + $0x268] sm:$0xff]
    %v222 = vld [vmem:[#allocation2 + $0x270] sm:$0xff]
    %v223 = vld [vmem:[#allocation2 + $0x278] sm:$0xff]
    %v224 = vld [vmem:[#allocation2 + $0x280] sm:$0xff]
    %v225 = vld [vmem:[#allocation2 + $0x288] sm:$0xff]
    %v226 = vld [vmem:[#allocation2 + $0x290] sm:$0xff]
    %v227 = vld [vmem:[#allocation2 + $0x298] sm:$0xff]
    %v228 = vld [vmem:[#allocation2 + $0x2a0] sm:$0xff]
    %v229 = vld [vmem:[#allocation2 + $0x2a8] sm:$0xff]
    %v230 = vld [vmem:[#allocation2 + $0x2b0] sm:$0xff]
    %v231 = vld [vmem:[#allocation2 + $0x2b8] sm:$0xff]
    %v232 = vld [vmem:[#allocation2 + $0x2c0] sm:$0xff]
    %v233 = vld [vmem:[#allocation2 + $0x2c8] sm:$0xff]
    %v234 = vld [vmem:[#allocation2 + $0x2d0] sm:$0xff]
    %v235 = vld [vmem:[#allocation2 + $0x2d8] sm:$0xff]
    %v236 = vld [vmem:[#allocation2 + $0x2e0] sm:$0xff]
    %v237 = vld [vmem:[#allocation2 + $0x2e8] sm:$0xff]
    %v238 = vld [vmem:[#allocation2 + $0x2f0] sm:$0xff]
    %v239 = vld [vmem:[#allocation2 + $0x2f8] sm:$0xff]
    %v240 = vld [vmem:[#allocation2 + $0x300] sm:$0xff]
    %v241 = vld [vmem:[#allocation2 + $0x308] sm:$0xff]
    %v242 = vld [vmem:[#allocation2 + $0x310] sm:$0xff]
    %v243 = vld [vmem:[#allocation2 + $0x318] sm:$0xff]
    %v244 = vld [vmem:[#allocation2 + $0x320] sm:$0xff]
    %v245 = vld [vmem:[#allocation2 + $0x328] sm:$0xff]
    %v246 = vld [vmem:[#allocation2 + $0x330] sm:$0xff]
    %v247 = vld [vmem:[#allocation2 + $0x338] sm:$0xff]
    %v248 = vld [vmem:[#allocation2 + $0x340] sm:$0xff]
    %v249 = vld [vmem:[#allocation2 + $0x348] sm:$0xff]
    %v250 = vld [vmem:[#allocation2 + $0x350] sm:$0xff]
    %v251 = vld [vmem:[#allocation2 + $0x358] sm:$0xff]
    %v252 = vld [vmem:[#allocation2 + $0x360] sm:$0xff]
    %v253 = vld [vmem:[#allocation2 + $0x368] sm:$0xff]
    %v254 = vld [vmem:[#allocation2 + $0x370] sm:$0xff]
    %v255 = vld [vmem:[#allocation2 + $0x378] sm:$0xff]
    %v256 = vld [vmem:[#allocation2 + $0x380] sm:$0xff]
    %v257 = vld [vmem:[#allocation2 + $0x388] sm:$0xff]
    %v258 = vld [vmem:[#allocation2 + $0x390] sm:$0xff]
    %v259 = vld [vmem:[#allocation2 + $0x398] sm:$0xff]
    %v260 = vld [vmem:[#allocation2 + $0x3a0] sm:$0xff]
    %v261 = vld [vmem:[#allocation2 + $0x3a8] sm:$0xff]
    %v262 = vld [vmem:[#allocation2 + $0x3b0] sm:$0xff]
    %v263 = vld [vmem:[#allocation2 + $0x3b8] sm:$0xff]
    %v264 = vld [vmem:[#allocation2 + $0x3c0] sm:$0xff]
    %v265 = vld [vmem:[#allocation2 + $0x3c8] sm:$0xff]
    %v266 = vld [vmem:[#allocation2 + $0x3d0] sm:$0xff]
    %v267 = vld [vmem:[#allocation2 + $0x3d8] sm:$0xff]
    %v268 = vld [vmem:[#allocation2 + $0x3e0] sm:$0xff]
    %v269 = vld [vmem:[#allocation2 + $0x3e8] sm:$0xff]
    %v270 = vld [vmem:[#allocation2 + $0x3f0] sm:$0xff]
    %v271 = vld [vmem:[#allocation2 + $0x3f8] sm:$0xff]
    %v272 = vld [vmem:[#allocation2 + $0x400] sm:$0xff]
    %v273 = vld [vmem:[#allocation2 + $0x408] sm:$0xff]
    %v274 = vld [vmem:[#allocation2 + $0x410] sm:$0xff]
    %v275 = vld [vmem:[#allocation2 + $0x418] sm:$0xff]
    %v276 = vld [vmem:[#allocation2 + $0x420] sm:$0xff]
    %v277 = vld [vmem:[#allocation2 + $0x428] sm:$0xff]
    %v278 = vld [vmem:[#allocation2 + $0x430] sm:$0xff]
    %v279 = vld [vmem:[#allocation2 + $0x438] sm:$0xff]
    %v280 = vld [vmem:[#allocation2 + $0x440] sm:$0xff]
    %v281 = vld [vmem:[#allocation2 + $0x448] sm:$0xff]
    %v282 = vld [vmem:[#allocation2 + $0x450] sm:$0xff]
    %v283 = vld [vmem:[#allocation2 + $0x458] sm:$0xff]
    %v284 = vld [vmem:[#allocation2 + $0x460] sm:$0xff]
    %v285 = vld [vmem:[#allocation2 + $0x468] sm:$0xff]
    %v286 = vld [vmem:[#allocation2 + $0x470] sm:$0xff]
    %v287 = vld [vmem:[#allocation2 + $0x478] sm:$0xff]
    %v288 = vld [vmem:[#allocation2 + $0x480] sm:$0xff]
    %v289 = vld [vmem:[#allocation2 + $0x488] sm:$0xff]
    %v290 = vld [vmem:[#allocation2 + $0x490] sm:$0xff]
    %v291 = vld [vmem:[#allocation2 + $0x498] sm:$0xff]
    %v292 = vld [vmem:[#allocation2 + $0x4a0] sm:$0xff]
    %v293 = vld [vmem:[#allocation2 + $0x4a8] sm:$0xff]
    %v294 = vld [vmem:[#allocation2 + $0x4b0] sm:$0xff]
    %v295 = vld [vmem:[#allocation2 + $0x4b8] sm:$0xff]
    %v296 = vld [vmem:[#allocation2 + $0x4c0] sm:$0xff]
    %v297 = vld [vmem:[#allocation2 + $0x4c8] sm:$0xff]
    %v298 = vld [vmem:[#allocation2 + $0x4d0] sm:$0xff]
    %v299 = vld [vmem:[#allocation2 + $0x4d8] sm:$0xff]
    %v300 = vld [vmem:[#allocation2 + $0x4e0] sm:$0xff]
    %v301 = vld [vmem:[#allocation2 + $0x4e8] sm:$0xff]
    %v302 = vld [vmem:[#allocation2 + $0x4f0] sm:$0xff]
    %v303 = vld [vmem:[#allocation2 + $0x4f8] sm:$0xff]
    %v304 = vld [vmem:[#allocation2 + $0x500] sm:$0xff]
    %v305 = vld [vmem:[#allocation2 + $0x508] sm:$0xff]
    %v306 = vld [vmem:[#allocation2 + $0x510] sm:$0xff]
    %v307 = vld [vmem:[#allocation2 + $0x518] sm:$0xff]
    %v308 = vld [vmem:[#allocation2 + $0x520] sm:$0xff]
    %v309 = vld [vmem:[#allocation2 + $0x528] sm:$0xff]
    %v310 = vld [vmem:[#allocation2 + $0x530] sm:$0xff]
    %v311 = vld [vmem:[#allocation2 + $0x538] sm:$0xff]
    %v312 = vld [vmem:[#allocation2 + $0x540] sm:$0xff]
    %v313 = vld [vmem:[#allocation2 + $0x548] sm:$0xff]
    %v314 = vld [vmem:[#allocation2 + $0x550] sm:$0xff]
    %v315 = vld [vmem:[#allocation2 + $0x558] sm:$0xff]
    %v316 = vld [vmem:[#allocation2 + $0x560] sm:$0xff]
    %v317 = vld [vmem:[#allocation2 + $0x568] sm:$0xff]
    %v318 = vld [vmem:[#allocation2 + $0x570] sm:$0xff]
    %v319 = vld [vmem:[#allocation2 + $0x578] sm:$0xff]
    %v320 = vld [vmem:[#allocation2 + $0x580] sm:$0xff]
    %v321 = vld [vmem:[#allocation2 + $0x588] sm:$0xff]
    %v322 = vld [vmem:[#allocation2 + $0x590] sm:$0xff]
    %v323 = vld [vmem:[#allocation2 + $0x598] sm:$0xff]
    %v324 = vld [vmem:[#allocation2 + $0x5a0] sm:$0xff]
    %v325 = vld [vmem:[#allocation2 + $0x5a8] sm:$0xff]
    %v326 = vld [vmem:[#allocation2 + $0x5b0] sm:$0xff]
    %v327 = vld [vmem:[#allocation2 + $0x5b8] sm:$0xff]
    %v328 = vld [vmem:[#allocation2 + $0x5c0] sm:$0xff]
    %v329 = vld [vmem:[#allocation2 + $0x5c8] sm:$0xff]
    %v330 = vld [vmem:[#allocation2 + $0x5d0] sm:$0xff]
    %v331 = vld [vmem:[#allocation2 + $0x5d8] sm:$0xff]
    %v332 = vld [vmem:[#allocation2 + $0x5e0] sm:$0xff]
    %v333 = vld [vmem:[#allocation2 + $0x5e8] sm:$0xff]
    %v334 = vld [vmem:[#allocation2 + $0x5f0] sm:$0xff]
    %v335 = vld [vmem:[#allocation2 + $0x5f8] sm:$0xff]
    %v336 = vld [vmem:[#allocation2 + $0x600] sm:$0xff]
    %v337 = vld [vmem:[#allocation2 + $0x608] sm:$0xff]
    %v338 = vld [vmem:[#allocation2 + $0x610] sm:$0xff]
    %v339 = vld [vmem:[#allocation2 + $0x618] sm:$0xff]
    %v340 = vld [vmem:[#allocation2 + $0x620] sm:$0xff]
    %v341 = vld [vmem:[#allocation2 + $0x628] sm:$0xff]
    %v342 = vld [vmem:[#allocation2 + $0x630] sm:$0xff]
    %v343 = vld [vmem:[#allocation2 + $0x638] sm:$0xff]
    %v344 = vld [vmem:[#allocation2 + $0x640] sm:$0xff]
    %v345 = vld [vmem:[#allocation2 + $0x648] sm:$0xff]
    %v346 = vld [vmem:[#allocation2 + $0x650] sm:$0xff]
    %v347 = vld [vmem:[#allocation2 + $0x658] sm:$0xff]
    %v348 = vld [vmem:[#allocation2 + $0x660] sm:$0xff]
    %v349 = vld [vmem:[#allocation2 + $0x668] sm:$0xff]
    %v350 = vld [vmem:[#allocation2 + $0x670] sm:$0xff]
    %v351 = vld [vmem:[#allocation2 + $0x678] sm:$0xff]
    %v352 = vld [vmem:[#allocation2 + $0x680] sm:$0xff]
    %v353 = vld [vmem:[#allocation2 + $0x688] sm:$0xff]
    %v354 = vld [vmem:[#allocation2 + $0x690] sm:$0xff]
    %v355 = vld [vmem:[#allocation2 + $0x698] sm:$0xff]
    %v356 = vld [vmem:[#allocation2 + $0x6a0] sm:$0xff]
    %v357 = vld [vmem:[#allocation2 + $0x6a8] sm:$0xff]
    %v358 = vld [vmem:[#allocation2 + $0x6b0] sm:$0xff]
    %v359 = vld [vmem:[#allocation2 + $0x6b8] sm:$0xff]
    %v360 = vld [vmem:[#allocation2 + $0x6c0] sm:$0xff]
    %v361 = vld [vmem:[#allocation2 + $0x6c8] sm:$0xff]
    %v362 = vld [vmem:[#allocation2 + $0x6d0] sm:$0xff]
    %v363 = vld [vmem:[#allocation2 + $0x6d8] sm:$0xff]
    %v364 = vld [vmem:[#allocation2 + $0x6e0] sm:$0xff]
    %v365 = vld [vmem:[#allocation2 + $0x6e8] sm:$0xff]
    %v366 = vld [vmem:[#allocation2 + $0x6f0] sm:$0xff]
    %v367 = vld [vmem:[#allocation2 + $0x6f8] sm:$0xff]
    %v368 = vld [vmem:[#allocation2 + $0x700] sm:$0xff]
    %v369 = vld [vmem:[#allocation2 + $0x708] sm:$0xff]
    %v370 = vld [vmem:[#allocation2 + $0x710] sm:$0xff]
    %v371 = vld [vmem:[#allocation2 + $0x718] sm:$0xff]
    %v372 = vld [vmem:[#allocation2 + $0x720] sm:$0xff]
    %v373 = vld [vmem:[#allocation2 + $0x728] sm:$0xff]
    %v374 = vld [vmem:[#allocation2 + $0x730] sm:$0xff]
    %v375 = vld [vmem:[#allocation2 + $0x738] sm:$0xff]
    %v376 = vld [vmem:[#allocation2 + $0x740] sm:$0xff]
    %v377 = vld [vmem:[#allocation2 + $0x748] sm:$0xff]
    %v378 = vld [vmem:[#allocation2 + $0x750] sm:$0xff]
    %v379 = vld [vmem:[#allocation2 + $0x758] sm:$0xff]
    %v380 = vld [vmem:[#allocation2 + $0x760] sm:$0xff]
    %v381 = vld [vmem:[#allocation2 + $0x768] sm:$0xff]
    %v382 = vld [vmem:[#allocation2 + $0x770] sm:$0xff]
    %v383 = vld [vmem:[#allocation2 + $0x778] sm:$0xff]
    %v384 = vld [vmem:[#allocation2 + $0x780] sm:$0xff]
    %v385 = vld [vmem:[#allocation2 + $0x788] sm:$0xff]
    %v386 = vld [vmem:[#allocation2 + $0x790] sm:$0xff]
    %v387 = vld [vmem:[#allocation2 + $0x798] sm:$0xff]
    %v388 = vld [vmem:[#allocation2 + $0x7a0] sm:$0xff]
    %v389 = vld [vmem:[#allocation2 + $0x7a8] sm:$0xff]
    %v390 = vld [vmem:[#allocation2 + $0x7b0] sm:$0xff]
    %v391 = vld [vmem:[#allocation2 + $0x7b8] sm:$0xff]
    %v392 = vld [vmem:[#allocation2 + $0x7c0] sm:$0xff]
    %v393 = vld [vmem:[#allocation2 + $0x7c8] sm:$0xff]
    %v394 = vld [vmem:[#allocation2 + $0x7d0] sm:$0xff]
    %v395 = vld [vmem:[#allocation2 + $0x7d8] sm:$0xff]
    %v396 = vld [vmem:[#allocation2 + $0x7e0] sm:$0xff]
    %v397 = vld [vmem:[#allocation2 + $0x7e8] sm:$0xff]
    %v398 = vld [vmem:[#allocation2 + $0x7f0] sm:$0xff]
    %v399 = vld [vmem:[#allocation2 + $0x7f8] sm:$0xff]
    %v400 = vld [vmem:[#allocation2 + $0x800] sm:$0xff]
    %v401 = vld [vmem:[#allocation2 + $0x808] sm:$0xff]
    %v402 = vld [vmem:[#allocation2 + $0x810] sm:$0xff]
    %v403 = vld [vmem:[#allocation2 + $0x818] sm:$0xff]
    %v404 = vld [vmem:[#allocation2 + $0x820] sm:$0xff]
    %v405 = vld [vmem:[#allocation2 + $0x828] sm:$0xff]
    %v406 = vld [vmem:[#allocation2 + $0x830] sm:$0xff]
    %v407 = vld [vmem:[#allocation2 + $0x838] sm:$0xff]
    %v408 = vld [vmem:[#allocation2 + $0x840] sm:$0xff]
    %v409 = vld [vmem:[#allocation2 + $0x848] sm:$0xff]
    %v410 = vld [vmem:[#allocation2 + $0x850] sm:$0xff]
    %v411 = vld [vmem:[#allocation2 + $0x858] sm:$0xff]
    %v412 = vld [vmem:[#allocation2 + $0x860] sm:$0xff]
    %v413 = vld [vmem:[#allocation2 + $0x868] sm:$0xff]
    %v414 = vld [vmem:[#allocation2 + $0x870] sm:$0xff]
    %v415 = vld [vmem:[#allocation2 + $0x878] sm:$0xff]
    %v416 = vld [vmem:[#allocation2 + $0x880] sm:$0xff]
    %v417 = vld [vmem:[#allocation2 + $0x888] sm:$0xff]
    %v418 = vld [vmem:[#allocation2 + $0x890] sm:$0xff]
    %v419 = vld [vmem:[#allocation2 + $0x898] sm:$0xff]
    %v420 = vld [vmem:[#allocation2 + $0x8a0] sm:$0xff]
    %v421 = vld [vmem:[#allocation2 + $0x8a8] sm:$0xff]
    %v422 = vld [vmem:[#allocation2 + $0x8b0] sm:$0xff]
    %v423 = vld [vmem:[#allocation2 + $0x8b8] sm:$0xff]
    %v424 = vld [vmem:[#allocation2 + $0x8c0] sm:$0xff]
    %v425 = vld [vmem:[#allocation2 + $0x8c8] sm:$0xff]
    %v426 = vld [vmem:[#allocation2 + $0x8d0] sm:$0xff]
    %v427 = vld [vmem:[#allocation2 + $0x8d8] sm:$0xff]
    %v428 = vld [vmem:[#allocation2 + $0x8e0] sm:$0xff]
    %v429 = vld [vmem:[#allocation2 + $0x8e8] sm:$0xff]
    %v430 = vld [vmem:[#allocation2 + $0x8f0] sm:$0xff]
    %v431 = vld [vmem:[#allocation2 + $0x8f8] sm:$0xff]
    %v432 = vld [vmem:[#allocation2 + $0x900] sm:$0xff]
    %v433 = vld [vmem:[#allocation2 + $0x908] sm:$0xff]
    %v434 = vld [vmem:[#allocation2 + $0x910] sm:$0xff]
    %v435 = vld [vmem:[#allocation2 + $0x918] sm:$0xff]
    %v436 = vld [vmem:[#allocation2 + $0x920] sm:$0xff]
    %v437 = vld [vmem:[#allocation2 + $0x928] sm:$0xff]
    %v438 = vld [vmem:[#allocation2 + $0x930] sm:$0xff]
    %v439 = vld [vmem:[#allocation2 + $0x938] sm:$0xff]
    %v440 = vld [vmem:[#allocation2 + $0x940] sm:$0xff]
    %v441 = vld [vmem:[#allocation2 + $0x948] sm:$0xff]
    %v442 = vld [vmem:[#allocation2 + $0x950] sm:$0xff]
    %v443 = vld [vmem:[#allocation2 + $0x958] sm:$0xff]
    %v444 = vld [vmem:[#allocation2 + $0x960] sm:$0xff]
    %v445 = vld [vmem:[#allocation2 + $0x968] sm:$0xff]
    %v446 = vld [vmem:[#allocation2 + $0x970] sm:$0xff]
    %v447 = vld [vmem:[#allocation2 + $0x978] sm:$0xff]
    %v448 = vld [vmem:[#allocation2 + $0x980] sm:$0xff]
    %v449 = vld [vmem:[#allocation2 + $0x988] sm:$0xff]
    %v450 = vld [vmem:[#allocation2 + $0x990] sm:$0xff]
    %v451 = vld [vmem:[#allocation2 + $0x998] sm:$0xff]
    %v452 = vld [vmem:[#allocation2 + $0x9a0] sm:$0xff]
    %v453 = vld [vmem:[#allocation2 + $0x9a8] sm:$0xff]
    %v454 = vld [vmem:[#allocation2 + $0x9b0] sm:$0xff]
    %v455 = vld [vmem:[#allocation2 + $0x9b8] sm:$0xff]
    %v456 = vld [vmem:[#allocation2 + $0x9c0] sm:$0xff]
    %v457 = vld [vmem:[#allocation2 + $0x9c8] sm:$0xff]
    %v458 = vld [vmem:[#allocation2 + $0x9d0] sm:$0xff]
    %v459 = vld [vmem:[#allocation2 + $0x9d8] sm:$0xff]
    %v460 = vld [vmem:[#allocation2 + $0x9e0] sm:$0xff]
    %v461 = vld [vmem:[#allocation2 + $0x9e8] sm:$0xff]
    %v462 = vld [vmem:[#allocation2 + $0x9f0] sm:$0xff]
    %v463 = vld [vmem:[#allocation2 + $0x9f8] sm:$0xff]
    %v464 = vld [vmem:[#allocation2 + $0xa00] sm:$0xff]
    %v465 = vld [vmem:[#allocation2 + $0xa08] sm:$0xff]
    %v466 = vld [vmem:[#allocation2 + $0xa10] sm:$0xff]
    %v467 = vld [vmem:[#allocation2 + $0xa18] sm:$0xff]
    %v468 = vld [vmem:[#allocation2 + $0xa20] sm:$0xff]
    %v469 = vld [vmem:[#allocation2 + $0xa28] sm:$0xff]
    %v470 = vld [vmem:[#allocation2 + $0xa30] sm:$0xff]
    %v471 = vld [vmem:[#allocation2 + $0xa38] sm:$0xff]
    %v472 = vld [vmem:[#allocation2 + $0xa40] sm:$0xff]
    %v473 = vld [vmem:[#allocation2 + $0xa48] sm:$0xff]
    %v474 = vld [vmem:[#allocation2 + $0xa50] sm:$0xff]
    %v475 = vld [vmem:[#allocation2 + $0xa58] sm:$0xff]
    %v476 = vld [vmem:[#allocation2 + $0xa60] sm:$0xff]
    %v477 = vld [vmem:[#allocation2 + $0xa68] sm:$0xff]
    %v478 = vld [vmem:[#allocation2 + $0xa70] sm:$0xff]
    %v479 = vld [vmem:[#allocation2 + $0xa78] sm:$0xff]
    %v480 = vld [vmem:[#allocation2 + $0xa80] sm:$0xff]
    %v481 = vld [vmem:[#allocation2 + $0xa88] sm:$0xff]
    %v482 = vld [vmem:[#allocation2 + $0xa90] sm:$0xff]
    %v483 = vld [vmem:[#allocation2 + $0xa98] sm:$0xff]
    %v484 = vld [vmem:[#allocation2 + $0xaa0] sm:$0xff]
    %v485 = vld [vmem:[#allocation2 + $0xaa8] sm:$0xff]
    %v486 = vld [vmem:[#allocation2 + $0xab0] sm:$0xff]
    %v487 = vld [vmem:[#allocation2 + $0xab8] sm:$0xff]
    %v488 = vld [vmem:[#allocation2 + $0xac0] sm:$0xff]
    %v489 = vld [vmem:[#allocation2 + $0xac8] sm:$0xff]
    %v490 = vld [vmem:[#allocation2 + $0xad0] sm:$0xff]
    %v491 = vld [vmem:[#allocation2 + $0xad8] sm:$0xff]
    %v492 = vld [vmem:[#allocation2 + $0xae0] sm:$0xff]
    %v493 = vld [vmem:[#allocation2 + $0xae8] sm:$0xff]
    %v494 = vld [vmem:[#allocation2 + $0xaf0] sm:$0xff]
    %v495 = vld [vmem:[#allocation2 + $0xaf8] sm:$0xff]
    %v496 = vld [vmem:[#allocation2 + $0xb00] sm:$0xff]
    %v497 = vld [vmem:[#allocation2 + $0xb08] sm:$0xff]
    %v498 = vld [vmem:[#allocation2 + $0xb10] sm:$0xff]
    %v499 = vld [vmem:[#allocation2 + $0xb18] sm:$0xff]
    %v500 = vld [vmem:[#allocation2 + $0xb20] sm:$0xff]
    %v501 = vld [vmem:[#allocation2 + $0xb28] sm:$0xff]
    %v502 = vld [vmem:[#allocation2 + $0xb30] sm:$0xff]
    %v503 = vld [vmem:[#allocation2 + $0xb38] sm:$0xff]
    %v504 = vld [vmem:[#allocation2 + $0xb40] sm:$0xff]
    %v505 = vld [vmem:[#allocation2 + $0xb48] sm:$0xff]
    %v506 = vld [vmem:[#allocation2 + $0xb50] sm:$0xff]
    %v507 = vld [vmem:[#allocation2 + $0xb58] sm:$0xff]
    %v508 = vld [vmem:[#allocation2 + $0xb60] sm:$0xff]
    %v509 = vld [vmem:[#allocation2 + $0xb68] sm:$0xff]
    %v510 = vld [vmem:[#allocation2 + $0xb70] sm:$0xff]
    %v511 = vld [vmem:[#allocation2 + $0xb78] sm:$0xff]
    %v512 = vld [vmem:[#allocation2 + $0xb80] sm:$0xff]
    %v513 = vld [vmem:[#allocation2 + $0xb88] sm:$0xff]
    %v514 = vld [vmem:[#allocation2 + $0xb90] sm:$0xff]
    %v515 = vld [vmem:[#allocation2 + $0xb98] sm:$0xff]
    %v516 = vld [vmem:[#allocation2 + $0xba0] sm:$0xff]
    %v517 = vld [vmem:[#allocation2 + $0xba8] sm:$0xff]
    %v518 = vld [vmem:[#allocation2 + $0xbb0] sm:$0xff]
    %v519 = vld [vmem:[#allocation2 + $0xbb8] sm:$0xff]
    %v520 = vld [vmem:[#allocation2 + $0xbc0] sm:$0xff]
    %v521 = vld [vmem:[#allocation2 + $0xbc8] sm:$0xff]
    %v522 = vld [vmem:[#allocation2 + $0xbd0] sm:$0xff]
    %v523 = vld [vmem:[#allocation2 + $0xbd8] sm:$0xff]
    %v524 = vld [vmem:[#allocation2 + $0xbe0] sm:$0xff]
    %v525 = vld [vmem:[#allocation2 + $0xbe8] sm:$0xff]
    %v526 = vld [vmem:[#allocation2 + $0xbf0] sm:$0xff]
    %v527 = vld [vmem:[#allocation2 + $0xbf8] sm:$0xff]
    %v528 = vld [vmem:[#allocation2 + $0xc00] sm:$0xff]
    %v529 = vld [vmem:[#allocation2 + $0xc08] sm:$0xff]
    %v530 = vld [vmem:[#allocation2 + $0xc10] sm:$0xff]
    %v531 = vld [vmem:[#allocation2 + $0xc18] sm:$0xff]
    %v532 = vld [vmem:[#allocation2 + $0xc20] sm:$0xff]
    %v533 = vld [vmem:[#allocation2 + $0xc28] sm:$0xff]
    %v534 = vld [vmem:[#allocation2 + $0xc30] sm:$0xff]
    %v535 = vld [vmem:[#allocation2 + $0xc38] sm:$0xff]
    %v536 = vld [vmem:[#allocation2 + $0xc40] sm:$0xff]
    %v537 = vld [vmem:[#allocation2 + $0xc48] sm:$0xff]
    %v538 = vld [vmem:[#allocation2 + $0xc50] sm:$0xff]
    %v539 = vld [vmem:[#allocation2 + $0xc58] sm:$0xff]
    %v540 = vld [vmem:[#allocation2 + $0xc60] sm:$0xff]
    %v541 = vld [vmem:[#allocation2 + $0xc68] sm:$0xff]
    %v542 = vld [vmem:[#allocation2 + $0xc70] sm:$0xff]
    %v543 = vld [vmem:[#allocation2 + $0xc78] sm:$0xff]
    %v544 = vld [vmem:[#allocation2 + $0xc80] sm:$0xff]
    %v545 = vld [vmem:[#allocation2 + $0xc88] sm:$0xff]
    %v546 = vld [vmem:[#allocation2 + $0xc90] sm:$0xff]
    %v547 = vld [vmem:[#allocation2 + $0xc98] sm:$0xff]
    %v548 = vld [vmem:[#allocation2 + $0xca0] sm:$0xff]
    %v549 = vld [vmem:[#allocation2 + $0xca8] sm:$0xff]
    %v550 = vld [vmem:[#allocation2 + $0xcb0] sm:$0xff]
    %v551 = vld [vmem:[#allocation2 + $0xcb8] sm:$0xff]
    %v552 = vld [vmem:[#allocation2 + $0xcc0] sm:$0xff]
    %v553 = vld [vmem:[#allocation2 + $0xcc8] sm:$0xff]
    %v554 = vld [vmem:[#allocation2 + $0xcd0] sm:$0xff]
    %v555 = vld [vmem:[#allocation2 + $0xcd8] sm:$0xff]
    %v556 = vld [vmem:[#allocation2 + $0xce0] sm:$0xff]
    %v557 = vld [vmem:[#allocation2 + $0xce8] sm:$0xff]
    %v558 = vld [vmem:[#allocation2 + $0xcf0] sm:$0xff]
    %v559 = vld [vmem:[#allocation2 + $0xcf8] sm:$0xff]
    %v560 = vld [vmem:[#allocation2 + $0xd00] sm:$0xff]
    %v561 = vld [vmem:[#allocation2 + $0xd08] sm:$0xff]
    %v562 = vld [vmem:[#allocation2 + $0xd10] sm:$0xff]
    %v563 = vld [vmem:[#allocation2 + $0xd18] sm:$0xff]
    %v564 = vld [vmem:[#allocation2 + $0xd20] sm:$0xff]
    %v565 = vld [vmem:[#allocation2 + $0xd28] sm:$0xff]
    %v566 = vld [vmem:[#allocation2 + $0xd30] sm:$0xff]
    %v567 = vld [vmem:[#allocation2 + $0xd38] sm:$0xff]
    %v568 = vld [vmem:[#allocation2 + $0xd40] sm:$0xff]
    %v569 = vld [vmem:[#allocation2 + $0xd48] sm:$0xff]
    %v570 = vld [vmem:[#allocation2 + $0xd50] sm:$0xff]
    %v571 = vld [vmem:[#allocation2 + $0xd58] sm:$0xff]
    %v572 = vld [vmem:[#allocation2 + $0xd60] sm:$0xff]
    %v573 = vld [vmem:[#allocation2 + $0xd68] sm:$0xff]
    %v574 = vld [vmem:[#allocation2 + $0xd70] sm:$0xff]
    %v575 = vld [vmem:[#allocation2 + $0xd78] sm:$0xff]
    %v576 = vld [vmem:[#allocation2 + $0xd80] sm:$0xff]
    %v577 = vld [vmem:[#allocation2 + $0xd88] sm:$0xff]
    %v578 = vld [vmem:[#allocation2 + $0xd90] sm:$0xff]
    %v579 = vld [vmem:[#allocation2 + $0xd98] sm:$0xff]
    %v580 = vld [vmem:[#allocation2 + $0xda0] sm:$0xff]
    %v581 = vld [vmem:[#allocation2 + $0xda8] sm:$0xff]
    %v582 = vld [vmem:[#allocation2 + $0xdb0] sm:$0xff]
    %v583 = vld [vmem:[#allocation2 + $0xdb8] sm:$0xff]
    %v584 = vld [vmem:[#allocation2 + $0xdc0] sm:$0xff]
    %v585 = vld [vmem:[#allocation2 + $0xdc8] sm:$0xff]
    %v586 = vld [vmem:[#allocation2 + $0xdd0] sm:$0xff]
    %v587 = vld [vmem:[#allocation2 + $0xdd8] sm:$0xff]
    %v588 = vld [vmem:[#allocation2 + $0xde0] sm:$0xff]
    %v589 = vld [vmem:[#allocation2 + $0xde8] sm:$0xff]
    %v590 = vld [vmem:[#allocation2 + $0xdf0] sm:$0xff]
    %v591 = vld [vmem:[#allocation2 + $0xdf8] sm:$0xff]
    %v592 = vld [vmem:[#allocation2 + $0xe00] sm:$0xff]
    %v593 = vld [vmem:[#allocation2 + $0xe08] sm:$0xff]
    %v594 = vld [vmem:[#allocation2 + $0xe10] sm:$0xff]
    %v595 = vld [vmem:[#allocation2 + $0xe18] sm:$0xff]
    %v596 = vld [vmem:[#allocation2 + $0xe20] sm:$0xff]
    %v597 = vld [vmem:[#allocation2 + $0xe28] sm:$0xff]
    %v598 = vld [vmem:[#allocation2 + $0xe30] sm:$0xff]
    %v599 = vld [vmem:[#allocation2 + $0xe38] sm:$0xff]
    %v600 = vld [vmem:[#allocation2 + $0xe40] sm:$0xff]
    %v601 = vld [vmem:[#allocation2 + $0xe48] sm:$0xff]
    %v602 = vld [vmem:[#allocation2 + $0xe50] sm:$0xff]
    %v603 = vld [vmem:[#allocation2 + $0xe58] sm:$0xff]
    %v604 = vld [vmem:[#allocation2 + $0xe60] sm:$0xff]
    %v605 = vld [vmem:[#allocation2 + $0xe68] sm:$0xff]
    %v606 = vld [vmem:[#allocation2 + $0xe70] sm:$0xff]
    %v607 = vld [vmem:[#allocation2 + $0xe78] sm:$0xff]
    %v608 = vld [vmem:[#allocation2 + $0xe80] sm:$0xff]
    %v609 = vld [vmem:[#allocation2 + $0xe88] sm:$0xff]
    %v610 = vld [vmem:[#allocation2 + $0xe90] sm:$0xff]
    %v611 = vld [vmem:[#allocation2 + $0xe98] sm:$0xff]
    %v612 = vld [vmem:[#allocation2 + $0xea0] sm:$0xff]
    %v613 = vld [vmem:[#allocation2 + $0xea8] sm:$0xff]
    %v614 = vld [vmem:[#allocation2 + $0xeb0] sm:$0xff]
    %v615 = vld [vmem:[#allocation2 + $0xeb8] sm:$0xff]
    %v616 = vld [vmem:[#allocation2 + $0xec0] sm:$0xff]
    %v617 = vld [vmem:[#allocation2 + $0xec8] sm:$0xff]
    %v618 = vld [vmem:[#allocation2 + $0xed0] sm:$0xff]
    %v619 = vld [vmem:[#allocation2 + $0xed8] sm:$0xff]
    %v620 = vld [vmem:[#allocation2 + $0xee0] sm:$0xff]
    %v621 = vld [vmem:[#allocation2 + $0xee8] sm:$0xff]
    %v622 = vld [vmem:[#allocation2 + $0xef0] sm:$0xff]
    %v623 = vld [vmem:[#allocation2 + $0xef8] sm:$0xff]
    %v624 = vld [vmem:[#allocation2 + $0xf00] sm:$0xff]
    %v625 = vld [vmem:[#allocation2 + $0xf08] sm:$0xff]
    %v626 = vld [vmem:[#allocation2 + $0xf10] sm:$0xff]
    %v627 = vld [vmem:[#allocation2 + $0xf18] sm:$0xff]
    %v628 = vld [vmem:[#allocation2 + $0xf20] sm:$0xff]
    %v629 = vld [vmem:[#allocation2 + $0xf28] sm:$0xff]
    %v630 = vld [vmem:[#allocation2 + $0xf30] sm:$0xff]
    %v631 = vld [vmem:[#allocation2 + $0xf38] sm:$0xff]
    %v632 = vld [vmem:[#allocation2 + $0xf40] sm:$0xff]
    %v633 = vld [vmem:[#allocation2 + $0xf48] sm:$0xff]
    %v634 = vld [vmem:[#allocation2 + $0xf50] sm:$0xff]
    %v635 = vld [vmem:[#allocation2 + $0xf58] sm:$0xff]
    %v636 = vld [vmem:[#allocation2 + $0xf60] sm:$0xff]
    %v637 = vld [vmem:[#allocation2 + $0xf68] sm:$0xff]
    %v638 = vld [vmem:[#allocation2 + $0xf70] sm:$0xff]
    %v639 = vld [vmem:[#allocation2 + $0xf78] sm:$0xff]
    %v640 = vld [vmem:[#allocation2 + $0xf80] sm:$0xff]
    %v641 = vld [vmem:[#allocation2 + $0xf88] sm:$0xff]
    %v642 = vld [vmem:[#allocation2 + $0xf90] sm:$0xff]
    %v643 = vld [vmem:[#allocation2 + $0xf98] sm:$0xff]
    %v644 = vld [vmem:[#allocation2 + $0xfa0] sm:$0xff]
    %v645 = vld [vmem:[#allocation2 + $0xfa8] sm:$0xff]
    %v646 = vld [vmem:[#allocation2 + $0xfb0] sm:$0xff]
    %v647 = vld [vmem:[#allocation2 + $0xfb8] sm:$0xff]
    %v648 = vld [vmem:[#allocation2 + $0xfc0] sm:$0xff]
    %v649 = vld [vmem:[#allocation2 + $0xfc8] sm:$0xff]
    %v650 = vld [vmem:[#allocation2 + $0xfd0] sm:$0xff]
    %v651 = vld [vmem:[#allocation2 + $0xfd8] sm:$0xff]
    %v652 = vld [vmem:[#allocation2 + $0xfe0] sm:$0xff]
    %v653 = vld [vmem:[#allocation2 + $0xfe8] sm:$0xff]
    %v654 = vld [vmem:[#allocation2 + $0xff0] sm:$0xff]
    %v655 = vld [vmem:[#allocation2 + $0xff8] sm:$0xff]
    %v656 = vld [vmem:[#allocation2 + $0x1000] sm:$0xff]
    %v657 = vld [vmem:[#allocation2 + $0x1008] sm:$0xff]
    %v658 = vld [vmem:[#allocation2 + $0x1010] sm:$0xff]
    %v659 = vld [vmem:[#allocation2 + $0x1018] sm:$0xff]
    %v660 = vld [vmem:[#allocation2 + $0x1020] sm:$0xff]
    %v661 = vld [vmem:[#allocation2 + $0x1028] sm:$0xff]
    %v662 = vld [vmem:[#allocation2 + $0x1030] sm:$0xff]
    %v663 = vld [vmem:[#allocation2 + $0x1038] sm:$0xff]
    %v664 = vld [vmem:[#allocation2 + $0x1040] sm:$0xff]
    %v665 = vld [vmem:[#allocation2 + $0x1048] sm:$0xff]
    %v666 = vld [vmem:[#allocation2 + $0x1050] sm:$0xff]
    %v667 = vld [vmem:[#allocation2 + $0x1058] sm:$0xff]
    %v668 = vld [vmem:[#allocation2 + $0x1060] sm:$0xff]
    %v669 = vld [vmem:[#allocation2 + $0x1068] sm:$0xff]
    %v670 = vld [vmem:[#allocation2 + $0x1070] sm:$0xff]
    %v671 = vld [vmem:[#allocation2 + $0x1078] sm:$0xff]
    %v672 = vld [vmem:[#allocation2 + $0x1080] sm:$0xff]
    %v673 = vld [vmem:[#allocation2 + $0x1088] sm:$0xff]
    %v674 = vld [vmem:[#allocation2 + $0x1090] sm:$0xff]
    %v675 = vld [vmem:[#allocation2 + $0x1098] sm:$0xff]
    %v676 = vld [vmem:[#allocation2 + $0x10a0] sm:$0xff]
    %v677 = vld [vmem:[#allocation2 + $0x10a8] sm:$0xff]
    %v678 = vld [vmem:[#allocation2 + $0x10b0] sm:$0xff]
    %v679 = vld [vmem:[#allocation2 + $0x10b8] sm:$0xff]
    %v680 = vld [vmem:[#allocation2 + $0x10c0] sm:$0xff]
    %v681 = vld [vmem:[#allocation2 + $0x10c8] sm:$0xff]
    %v682 = vld [vmem:[#allocation2 + $0x10d0] sm:$0xff]
    %v683 = vld [vmem:[#allocation2 + $0x10d8] sm:$0xff]
    %v684 = vld [vmem:[#allocation2 + $0x10e0] sm:$0xff]
    %v685 = vld [vmem:[#allocation2 + $0x10e8] sm:$0xff]
    %v686 = vld [vmem:[#allocation2 + $0x10f0] sm:$0xff]
    %v687 = vld [vmem:[#allocation2 + $0x10f8] sm:$0xff]
    %v688 = vld [vmem:[#allocation2 + $0x1100] sm:$0xff]
    %v689 = vld [vmem:[#allocation2 + $0x1108] sm:$0xff]
    %v690 = vld [vmem:[#allocation2 + $0x1110] sm:$0xff]
    %v691 = vld [vmem:[#allocation2 + $0x1118] sm:$0xff]
    %v692 = vld [vmem:[#allocation2 + $0x1120] sm:$0xff]
    %v693 = vld [vmem:[#allocation2 + $0x1128] sm:$0xff]
    %v694 = vld [vmem:[#allocation2 + $0x1130] sm:$0xff]
    %v695 = vld [vmem:[#allocation2 + $0x1138] sm:$0xff]
    %v696 = vld [vmem:[#allocation2 + $0x1140] sm:$0xff]
    %v697 = vld [vmem:[#allocation2 + $0x1148] sm:$0xff]
    %v698 = vld [vmem:[#allocation2 + $0x1150] sm:$0xff]
    %v699 = vld [vmem:[#allocation2 + $0x1158] sm:$0xff]
    %v700 = vld [vmem:[#allocation2 + $0x1160] sm:$0xff]
    %v701 = vld [vmem:[#allocation2 + $0x1168] sm:$0xff]
    %v702 = vld [vmem:[#allocation2 + $0x1170] sm:$0xff]
    %v703 = vld [vmem:[#allocation2 + $0x1178] sm:$0xff]
    %v704 = vld [vmem:[#allocation2 + $0x1180] sm:$0xff]
    %v705 = vld [vmem:[#allocation2 + $0x1188] sm:$0xff]
    %v706 = vld [vmem:[#allocation2 + $0x1190] sm:$0xff]
    %v707 = vld [vmem:[#allocation2 + $0x1198] sm:$0xff]
    %v708 = vld [vmem:[#allocation2 + $0x11a0] sm:$0xff]
    %v709 = vld [vmem:[#allocation2 + $0x11a8] sm:$0xff]
    %v710 = vld [vmem:[#allocation2 + $0x11b0] sm:$0xff]
    %v711 = vld [vmem:[#allocation2 + $0x11b8] sm:$0xff]
    %v712 = vld [vmem:[#allocation2 + $0x11c0] sm:$0xff]
    %v713 = vld [vmem:[#allocation2 + $0x11c8] sm:$0xff]
    %v714 = vld [vmem:[#allocation2 + $0x11d0] sm:$0xff]
    %v715 = vld [vmem:[#allocation2 + $0x11d8] sm:$0xff]
    %v716 = vld [vmem:[#allocation2 + $0x11e0] sm:$0xff]
    %v717 = vld [vmem:[#allocation2 + $0x11e8] sm:$0xff]
    %v718 = vld [vmem:[#allocation2 + $0x11f0] sm:$0xff]
    %v719 = vld [vmem:[#allocation2 + $0x11f8] sm:$0xff]
    %v720 = vld [vmem:[#allocation2 + $0x1200] sm:$0xff]
    %v721 = vld [vmem:[#allocation2 + $0x1208] sm:$0xff]
    %v722 = vld [vmem:[#allocation2 + $0x1210] sm:$0xff]
    %v723 = vld [vmem:[#allocation2 + $0x1218] sm:$0xff]
    %v724 = vld [vmem:[#allocation2 + $0x1220] sm:$0xff]
    %v725 = vld [vmem:[#allocation2 + $0x1228] sm:$0xff]
    %v726 = vld [vmem:[#allocation2 + $0x1230] sm:$0xff]
    %v727 = vld [vmem:[#allocation2 + $0x1238] sm:$0xff]
    %v728 = vld [vmem:[#allocation2 + $0x1240] sm:$0xff]
    %v729 = vld [vmem:[#allocation2 + $0x1248] sm:$0xff]
    %v730 = vld [vmem:[#allocation2 + $0x1250] sm:$0xff]
    %v731 = vld [vmem:[#allocation2 + $0x1258] sm:$0xff]
    %v732 = vld [vmem:[#allocation2 + $0x1260] sm:$0xff]
    %v733 = vld [vmem:[#allocation2 + $0x1268] sm:$0xff]
    %v734 = vld [vmem:[#allocation2 + $0x1270] sm:$0xff]
    %v735 = vld [vmem:[#allocation2 + $0x1278] sm:$0xff]
    %v736 = vld [vmem:[#allocation2 + $0x1280] sm:$0xff]
    %v737 = vld [vmem:[#allocation2 + $0x1288] sm:$0xff]
    %v738 = vld [vmem:[#allocation2 + $0x1290] sm:$0xff]
    %v739 = vld [vmem:[#allocation2 + $0x1298] sm:$0xff]
    %v740 = vld [vmem:[#allocation2 + $0x12a0] sm:$0xff]
    %v741 = vld [vmem:[#allocation2 + $0x12a8] sm:$0xff]
    %v742 = vld [vmem:[#allocation2 + $0x12b0] sm:$0xff]
    %v743 = vld [vmem:[#allocation2 + $0x12b8] sm:$0xff]
    %v744 = vld [vmem:[#allocation2 + $0x12c0] sm:$0xff]
    %v745 = vld [vmem:[#allocation2 + $0x12c8] sm:$0xff]
    %v746 = vld [vmem:[#allocation2 + $0x12d0] sm:$0xff]
    %v747 = vld [vmem:[#allocation2 + $0x12d8] sm:$0xff]
    %v748 = vld [vmem:[#allocation2 + $0x12e0] sm:$0xff]
    %v749 = vld [vmem:[#allocation2 + $0x12e8] sm:$0xff]
    %v750 = vld [vmem:[#allocation2 + $0x12f0] sm:$0xff]
    %v751 = vld [vmem:[#allocation2 + $0x12f8] sm:$0xff]
    %v752 = vld [vmem:[#allocation2 + $0x1300] sm:$0xff]
    %v753 = vld [vmem:[#allocation2 + $0x1308] sm:$0xff]
    %v754 = vld [vmem:[#allocation2 + $0x1310] sm:$0xff]
    %v755 = vld [vmem:[#allocation2 + $0x1318] sm:$0xff]
    %v756 = vld [vmem:[#allocation2 + $0x1320] sm:$0xff]
    %v757 = vld [vmem:[#allocation2 + $0x1328] sm:$0xff]
    %v758 = vld [vmem:[#allocation2 + $0x1330] sm:$0xff]
    %v759 = vld [vmem:[#allocation2 + $0x1338] sm:$0xff]
    %v760 = vld [vmem:[#allocation2 + $0x1340] sm:$0xff]
    %v761 = vld [vmem:[#allocation2 + $0x1348] sm:$0xff]
    %v762 = vld [vmem:[#allocation2 + $0x1350] sm:$0xff]
    %v763 = vld [vmem:[#allocation2 + $0x1358] sm:$0xff]
    %v764 = vld [vmem:[#allocation2 + $0x1360] sm:$0xff]
    %v765 = vld [vmem:[#allocation2 + $0x1368] sm:$0xff]
    %v766 = vld [vmem:[#allocation2 + $0x1370] sm:$0xff]
    %v767 = vld [vmem:[#allocation2 + $0x1378] sm:$0xff]
    %v768 = vld [vmem:[#allocation2 + $0x1380] sm:$0xff]
    %v769 = vpack.c.bf16 %v145, %v144
    %v770 = vpack.c.bf16 %v147, %v146
    %v771 = vpack.c.bf16 %v149, %v148
    %v772 = vpack.c.bf16 %v151, %v150
    %v773 = vpack.c.bf16 %v153, %v152
    %v774 = vpack.c.bf16 %v155, %v154
    %v775 = vpack.c.bf16 %v157, %v156
    %v776 = vpack.c.bf16 %v159, %v158
    %v777 = vpack.c.bf16 %v161, %v160
    %v778 = vpack.c.bf16 %v163, %v162
    %v779 = vpack.c.bf16 %v165, %v164
    %v780 = vpack.c.bf16 %v167, %v166
    %v781 = vpack.c.bf16 %v169, %v168
    %v782 = vpack.c.bf16 %v171, %v170
    %v783 = vpack.c.bf16 %v173, %v172
    %v784 = vpack.c.bf16 %v175, %v174
    %v785 = vpack.c.bf16 %v177, %v176
    %v786 = vpack.c.bf16 %v179, %v178
    %v787 = vpack.c.bf16 %v181, %v180
    %v788 = vpack.c.bf16 %v183, %v182
    %v789 = vpack.c.bf16 %v185, %v184
    %v790 = vpack.c.bf16 %v187, %v186
    %v791 = vpack.c.bf16 %v189, %v188
    %v792 = vpack.c.bf16 %v191, %v190
    %v793 = vpack.c.bf16 %v193, %v192
    %v794 = vpack.c.bf16 %v195, %v194
    %v795 = vpack.c.bf16 %v197, %v196
    %v796 = vpack.c.bf16 %v199, %v198
    %v797 = vpack.c.bf16 %v201, %v200
    %v798 = vpack.c.bf16 %v203, %v202
    %v799 = vpack.c.bf16 %v205, %v204
    %v800 = vpack.c.bf16 %v207, %v206
    %v801 = vpack.c.bf16 %v209, %v208
    %v802 = vpack.c.bf16 %v211, %v210
    %v803 = vpack.c.bf16 %v213, %v212
    %v804 = vpack.c.bf16 %v215, %v214
    %v805 = vpack.c.bf16 %v217, %v216
    %v806 = vpack.c.bf16 %v219, %v218
    %v807 = vpack.c.bf16 %v221, %v220
    %v808 = vpack.c.bf16 %v223, %v222
    %v809 = vpack.c.bf16 %v225, %v224
    %v810 = vpack.c.bf16 %v227, %v226
    %v811 = vpack.c.bf16 %v229, %v228
    %v812 = vpack.c.bf16 %v231, %v230
    %v813 = vpack.c.bf16 %v233, %v232
    %v814 = vpack.c.bf16 %v235, %v234
    %v815 = vpack.c.bf16 %v237, %v236
    %v816 = vpack.c.bf16 %v239, %v238
    %v817 = vpack.c.bf16 %v241, %v240
    %v818 = vpack.c.bf16 %v243, %v242
    %v819 = vpack.c.bf16 %v245, %v244
    %v820 = vpack.c.bf16 %v247, %v246
    %v821 = vpack.c.bf16 %v249, %v248
    %v822 = vpack.c.bf16 %v251, %v250
    %v823 = vpack.c.bf16 %v253, %v252
    %v824 = vpack.c.bf16 %v255, %v254
    %v825 = vpack.c.bf16 %v257, %v256
    %v826 = vpack.c.bf16 %v259, %v258
    %v827 = vpack.c.bf16 %v261, %v260
    %v828 = vpack.c.bf16 %v263, %v262
    %v829 = vpack.c.bf16 %v265, %v264
    %v830 = vpack.c.bf16 %v267, %v266
    %v831 = vpack.c.bf16 %v269, %v268
    %v832 = vpack.c.bf16 %v271, %v270
    %v833 = vpack.c.bf16 %v273, %v272
    %v834 = vpack.c.bf16 %v275, %v274
    %v835 = vpack.c.bf16 %v277, %v276
    %v836 = vpack.c.bf16 %v279, %v278
    %v837 = vpack.c.bf16 %v281, %v280
    %v838 = vpack.c.bf16 %v283, %v282
    %v839 = vpack.c.bf16 %v285, %v284
    %v840 = vpack.c.bf16 %v287, %v286
    %v841 = vpack.c.bf16 %v289, %v288
    %v842 = vpack.c.bf16 %v291, %v290
    %v843 = vpack.c.bf16 %v293, %v292
    %v844 = vpack.c.bf16 %v295, %v294
    %v845 = vpack.c.bf16 %v297, %v296
    %v846 = vpack.c.bf16 %v299, %v298
    %v847 = vpack.c.bf16 %v301, %v300
    %v848 = vpack.c.bf16 %v303, %v302
    %v849 = vpack.c.bf16 %v305, %v304
    %v850 = vpack.c.bf16 %v307, %v306
    %v851 = vpack.c.bf16 %v309, %v308
    %v852 = vpack.c.bf16 %v311, %v310
    %v853 = vpack.c.bf16 %v313, %v312
    %v854 = vpack.c.bf16 %v315, %v314
    %v855 = vpack.c.bf16 %v317, %v316
    %v856 = vpack.c.bf16 %v319, %v318
    %v857 = vpack.c.bf16 %v321, %v320
    %v858 = vpack.c.bf16 %v323, %v322
    %v859 = vpack.c.bf16 %v325, %v324
    %v860 = vpack.c.bf16 %v327, %v326
    %v861 = vpack.c.bf16 %v329, %v328
    %v862 = vpack.c.bf16 %v331, %v330
    %v863 = vpack.c.bf16 %v333, %v332
    %v864 = vpack.c.bf16 %v335, %v334
    %v865 = vpack.c.bf16 %v337, %v336
    %v866 = vpack.c.bf16 %v339, %v338
    %v867 = vpack.c.bf16 %v341, %v340
    %v868 = vpack.c.bf16 %v343, %v342
    %v869 = vpack.c.bf16 %v345, %v344
    %v870 = vpack.c.bf16 %v347, %v346
    %v871 = vpack.c.bf16 %v349, %v348
    %v872 = vpack.c.bf16 %v351, %v350
    %v873 = vpack.c.bf16 %v353, %v352
    %v874 = vpack.c.bf16 %v355, %v354
    %v875 = vpack.c.bf16 %v357, %v356
    %v876 = vpack.c.bf16 %v359, %v358
    %v877 = vpack.c.bf16 %v361, %v360
    %v878 = vpack.c.bf16 %v363, %v362
    %v879 = vpack.c.bf16 %v365, %v364
    %v880 = vpack.c.bf16 %v367, %v366
    %v881 = vpack.c.bf16 %v369, %v368
    %v882 = vpack.c.bf16 %v371, %v370
    %v883 = vpack.c.bf16 %v373, %v372
    %v884 = vpack.c.bf16 %v375, %v374
    %v885 = vpack.c.bf16 %v377, %v376
    %v886 = vpack.c.bf16 %v379, %v378
    %v887 = vpack.c.bf16 %v381, %v380
    %v888 = vpack.c.bf16 %v383, %v382
    %v889 = vpack.c.bf16 %v385, %v384
    %v890 = vpack.c.bf16 %v387, %v386
    %v891 = vpack.c.bf16 %v389, %v388
    %v892 = vpack.c.bf16 %v391, %v390
    %v893 = vpack.c.bf16 %v393, %v392
    %v894 = vpack.c.bf16 %v395, %v394
    %v895 = vpack.c.bf16 %v397, %v396
    %v896 = vpack.c.bf16 %v399, %v398
    %v897 = vpack.c.bf16 %v401, %v400
    %v898 = vpack.c.bf16 %v403, %v402
    %v899 = vpack.c.bf16 %v405, %v404
    %v900 = vpack.c.bf16 %v407, %v406
    %v901 = vpack.c.bf16 %v409, %v408
    %v902 = vpack.c.bf16 %v411, %v410
    %v903 = vpack.c.bf16 %v413, %v412
    %v904 = vpack.c.bf16 %v415, %v414
    %v905 = vpack.c.bf16 %v417, %v416
    %v906 = vpack.c.bf16 %v419, %v418
    %v907 = vpack.c.bf16 %v421, %v420
    %v908 = vpack.c.bf16 %v423, %v422
    %v909 = vpack.c.bf16 %v425, %v424
    %v910 = vpack.c.bf16 %v427, %v426
    %v911 = vpack.c.bf16 %v429, %v428
    %v912 = vpack.c.bf16 %v431, %v430
    %v913 = vpack.c.bf16 %v433, %v432
    %v914 = vpack.c.bf16 %v435, %v434
    %v915 = vpack.c.bf16 %v437, %v436
    %v916 = vpack.c.bf16 %v439, %v438
    %v917 = vpack.c.bf16 %v441, %v440
    %v918 = vpack.c.bf16 %v443, %v442
    %v919 = vpack.c.bf16 %v445, %v444
    %v920 = vpack.c.bf16 %v447, %v446
    %v921 = vpack.c.bf16 %v449, %v448
    %v922 = vpack.c.bf16 %v451, %v450
    %v923 = vpack.c.bf16 %v453, %v452
    %v924 = vpack.c.bf16 %v455, %v454
    %v925 = vpack.c.bf16 %v457, %v456
    %v926 = vpack.c.bf16 %v459, %v458
    %v927 = vpack.c.bf16 %v461, %v460
    %v928 = vpack.c.bf16 %v463, %v462
    %v929 = vpack.c.bf16 %v465, %v464
    %v930 = vpack.c.bf16 %v467, %v466
    %v931 = vpack.c.bf16 %v469, %v468
    %v932 = vpack.c.bf16 %v471, %v470
    %v933 = vpack.c.bf16 %v473, %v472
    %v934 = vpack.c.bf16 %v475, %v474
    %v935 = vpack.c.bf16 %v477, %v476
    %v936 = vpack.c.bf16 %v479, %v478
    %v937 = vpack.c.bf16 %v481, %v480
    %v938 = vpack.c.bf16 %v483, %v482
    %v939 = vpack.c.bf16 %v485, %v484
    %v940 = vpack.c.bf16 %v487, %v486
    %v941 = vpack.c.bf16 %v489, %v488
    %v942 = vpack.c.bf16 %v491, %v490
    %v943 = vpack.c.bf16 %v493, %v492
    %v944 = vpack.c.bf16 %v495, %v494
    %v945 = vpack.c.bf16 %v497, %v496
    %v946 = vpack.c.bf16 %v499, %v498
    %v947 = vpack.c.bf16 %v501, %v500
    %v948 = vpack.c.bf16 %v503, %v502
    %v949 = vpack.c.bf16 %v505, %v504
    %v950 = vpack.c.bf16 %v507, %v506
    %v951 = vpack.c.bf16 %v509, %v508
    %v952 = vpack.c.bf16 %v511, %v510
    %v953 = vpack.c.bf16 %v513, %v512
    %v954 = vpack.c.bf16 %v515, %v514
    %v955 = vpack.c.bf16 %v517, %v516
    %v956 = vpack.c.bf16 %v519, %v518
    %v957 = vpack.c.bf16 %v521, %v520
    %v958 = vpack.c.bf16 %v523, %v522
    %v959 = vpack.c.bf16 %v525, %v524
    %v960 = vpack.c.bf16 %v527, %v526
    %v961 = vpack.c.bf16 %v529, %v528
    %v962 = vpack.c.bf16 %v531, %v530
    %v963 = vpack.c.bf16 %v533, %v532
    %v964 = vpack.c.bf16 %v535, %v534
    %v965 = vpack.c.bf16 %v537, %v536
    %v966 = vpack.c.bf16 %v539, %v538
    %v967 = vpack.c.bf16 %v541, %v540
    %v968 = vpack.c.bf16 %v543, %v542
    %v969 = vpack.c.bf16 %v545, %v544
    %v970 = vpack.c.bf16 %v547, %v546
    %v971 = vpack.c.bf16 %v549, %v548
    %v972 = vpack.c.bf16 %v551, %v550
    %v973 = vpack.c.bf16 %v553, %v552
    %v974 = vpack.c.bf16 %v555, %v554
    %v975 = vpack.c.bf16 %v557, %v556
    %v976 = vpack.c.bf16 %v559, %v558
    %v977 = vpack.c.bf16 %v561, %v560
    %v978 = vpack.c.bf16 %v563, %v562
    %v979 = vpack.c.bf16 %v565, %v564
    %v980 = vpack.c.bf16 %v567, %v566
    %v981 = vpack.c.bf16 %v569, %v568
    %v982 = vpack.c.bf16 %v571, %v570
    %v983 = vpack.c.bf16 %v573, %v572
    %v984 = vpack.c.bf16 %v575, %v574
    %v985 = vpack.c.bf16 %v577, %v576
    %v986 = vpack.c.bf16 %v579, %v578
    %v987 = vpack.c.bf16 %v581, %v580
    %v988 = vpack.c.bf16 %v583, %v582
    %v989 = vpack.c.bf16 %v585, %v584
    %v990 = vpack.c.bf16 %v587, %v586
    %v991 = vpack.c.bf16 %v589, %v588
    %v992 = vpack.c.bf16 %v591, %v590
    %v993 = vpack.c.bf16 %v593, %v592
    %v994 = vpack.c.bf16 %v595, %v594
    %v995 = vpack.c.bf16 %v597, %v596
    %v996 = vpack.c.bf16 %v599, %v598
    %v997 = vpack.c.bf16 %v601, %v600
    %v998 = vpack.c.bf16 %v603, %v602
    %v999 = vpack.c.bf16 %v605, %v604
    %v1000 = vpack.c.bf16 %v607, %v606
    %v1001 = vpack.c.bf16 %v609, %v608
    %v1002 = vpack.c.bf16 %v611, %v610
    %v1003 = vpack.c.bf16 %v613, %v612
    %v1004 = vpack.c.bf16 %v615, %v614
    %v1005 = vpack.c.bf16 %v617, %v616
    %v1006 = vpack.c.bf16 %v619, %v618
    %v1007 = vpack.c.bf16 %v621, %v620
    %v1008 = vpack.c.bf16 %v623, %v622
    %v1009 = vpack.c.bf16 %v625, %v624
    %v1010 = vpack.c.bf16 %v627, %v626
    %v1011 = vpack.c.bf16 %v629, %v628
    %v1012 = vpack.c.bf16 %v631, %v630
    %v1013 = vpack.c.bf16 %v633, %v632
    %v1014 = vpack.c.bf16 %v635, %v634
    %v1015 = vpack.c.bf16 %v637, %v636
    %v1016 = vpack.c.bf16 %v639, %v638
    %v1017 = vpack.c.bf16 %v641, %v640
    %v1018 = vpack.c.bf16 %v643, %v642
    %v1019 = vpack.c.bf16 %v645, %v644
    %v1020 = vpack.c.bf16 %v647, %v646
    %v1021 = vpack.c.bf16 %v649, %v648
    %v1022 = vpack.c.bf16 %v651, %v650
    %v1023 = vpack.c.bf16 %v653, %v652
    %v1024 = vpack.c.bf16 %v655, %v654
    %v1025 = vpack.c.bf16 %v657, %v656
    %v1026 = vpack.c.bf16 %v659, %v658
    %v1027 = vpack.c.bf16 %v661, %v660
    %v1028 = vpack.c.bf16 %v663, %v662
    %v1029 = vpack.c.bf16 %v665, %v664
    %v1030 = vpack.c.bf16 %v667, %v666
    %v1031 = vpack.c.bf16 %v669, %v668
    %v1032 = vpack.c.bf16 %v671, %v670
    %v1033 = vpack.c.bf16 %v673, %v672
    %v1034 = vpack.c.bf16 %v675, %v674
    %v1035 = vpack.c.bf16 %v677, %v676
    %v1036 = vpack.c.bf16 %v679, %v678
    %v1037 = vpack.c.bf16 %v681, %v680
    %v1038 = vpack.c.bf16 %v683, %v682
    %v1039 = vpack.c.bf16 %v685, %v684
    %v1040 = vpack.c.bf16 %v687, %v686
    %v1041 = vpack.c.bf16 %v689, %v688
    %v1042 = vpack.c.bf16 %v691, %v690
    %v1043 = vpack.c.bf16 %v693, %v692
    %v1044 = vpack.c.bf16 %v695, %v694
    %v1045 = vpack.c.bf16 %v697, %v696
    %v1046 = vpack.c.bf16 %v699, %v698
    %v1047 = vpack.c.bf16 %v701, %v700
    %v1048 = vpack.c.bf16 %v703, %v702
    %v1049 = vpack.c.bf16 %v705, %v704
    %v1050 = vpack.c.bf16 %v707, %v706
    %v1051 = vpack.c.bf16 %v709, %v708
    %v1052 = vpack.c.bf16 %v711, %v710
    %v1053 = vpack.c.bf16 %v713, %v712
    %v1054 = vpack.c.bf16 %v715, %v714
    %v1055 = vpack.c.bf16 %v717, %v716
    %v1056 = vpack.c.bf16 %v719, %v718
    %v1057 = vpack.c.bf16 %v721, %v720
    %v1058 = vpack.c.bf16 %v723, %v722
    %v1059 = vpack.c.bf16 %v725, %v724
    %v1060 = vpack.c.bf16 %v727, %v726
    %v1061 = vpack.c.bf16 %v729, %v728
    %v1062 = vpack.c.bf16 %v731, %v730
    %v1063 = vpack.c.bf16 %v733, %v732
    %v1064 = vpack.c.bf16 %v735, %v734
    %v1065 = vpack.c.bf16 %v737, %v736
    %v1066 = vpack.c.bf16 %v739, %v738
    %v1067 = vpack.c.bf16 %v741, %v740
    %v1068 = vpack.c.bf16 %v743, %v742
    %v1069 = vpack.c.bf16 %v745, %v744
    %v1070 = vpack.c.bf16 %v747, %v746
    %v1071 = vpack.c.bf16 %v749, %v748
    %v1072 = vpack.c.bf16 %v751, %v750
    %v1073 = vpack.c.bf16 %v753, %v752
    %v1074 = vpack.c.bf16 %v755, %v754
    %v1075 = vpack.c.bf16 %v757, %v756
    %v1076 = vpack.c.bf16 %v759, %v758
    %v1077 = vpack.c.bf16 %v761, %v760
    %v1078 = vpack.c.bf16 %v763, %v762
    %v1079 = vpack.c.bf16 %v765, %v764
    %v1080 = vpack.c.bf16 %v767, %v766
    %v1081 = vpack.c.bf16 %v768, %v768
    %v1082 = vld [vmem:[#allocation4] sm:$0x1]
    %v1084 = vlaneseq
    %v1085 = vshrl.u32 %v1084, 7
    %v1086 = vsub.s32 0, %v1085
    %v1087 = vrot.slane %v1082, %v1086
    %vm1089 = vcmask 64512
    %v1091 = vsel %vm1089, %v143, 0
    %vm1093 = vcmask 1043456
    %v1095 = vsel %vm1093, %v1081, 0
    %1097 = vmatprep.subr.bf16.mxu0 0
    %1098 = vmatpush1.bf16.msra.mxu0 %v776
    %1099 = vmatprep.subr.bf16.mxu0 0
    %1100 = vmatpush1.bf16.msra.mxu0 %v775
    %1101 = vmatprep.subr.bf16.mxu0 0
    %1102 = vmatpush1.bf16.msra.mxu0 %v774
    %1103 = vmatprep.subr.bf16.mxu0 0
    %1104 = vmatpush1.bf16.msra.mxu0 %v773
    %1105 = vmatprep.subr.bf16.mxu0 0
    %1106 = vmatpush1.bf16.msra.mxu0 %v772
    %1107 = vmatprep.subr.bf16.mxu0 0
    %1108 = vmatpush1.bf16.msra.mxu0 %v771
    %1109 = vmatprep.subr.bf16.mxu0 0
    %1110 = vmatpush1.bf16.msra.mxu0 %v770
    %1111 = vmatprep.subr.bf16.mxu0 0
    %1112 = vmatpush1.bf16.msra.mxu0 %v769
    %1113 = vmatprep.subr.bf16.mxu0 0
    %1114 = vmatpush2.bf16.msra.mxu0 %v784
    %1115 = vmatprep.subr.bf16.mxu0 0
    %1116 = vmatpush2.bf16.msra.mxu0 %v783
    %1117 = vmatprep.subr.bf16.mxu0 0
    %1118 = vmatpush2.bf16.msra.mxu0 %v782
    %1119 = vmatprep.subr.bf16.mxu0 0
    %1120 = vmatpush2.bf16.msra.mxu0 %v781
    %1121 = vmatprep.subr.bf16.mxu0 0
    %1122 = vmatpush2.bf16.msra.mxu0 %v780
    %1123 = vmatprep.subr.bf16.mxu0 0
    %1124 = vmatpush2.bf16.msra.mxu0 %v779
    %1125 = vmatprep.subr.bf16.mxu0 0
    %1126 = vmatpush2.bf16.msra.mxu0 %v778
    %1127 = vmatprep.subr.bf16.mxu0 0
    %1128 = vmatpush2.bf16.msra.mxu0 %v777
    %1129 = vmatprep.mubr.bf16.mxu0 %v105
    %1130 = vmatmul.mubr.bf16.gmra.mxu0 %v104
    %v1131 = vpop.f32.mrf.mxu0
    %v1132 = vadd.f32 %v1087, %v1131
    %v1133 = vpop.f32.mrf.mxu0
    %v1134 = vpop.f32.mrf.mxu0
    %v1135 = vpop.f32.mrf.mxu0
    %1136 = vdwg.mxu0
    %1137 = vmatprep.subr.bf16.mxu0 0
    %1138 = vmatpush1.bf16.msra.mxu0 %v792
    %1139 = vmatprep.subr.bf16.mxu0 0
    %1140 = vmatpush1.bf16.msra.mxu0 %v791
    %1141 = vmatprep.subr.bf16.mxu0 0
    %1142 = vmatpush1.bf16.msra.mxu0 %v790
    %1143 = vmatprep.subr.bf16.mxu0 0
    %1144 = vmatpush1.bf16.msra.mxu0 %v789
    %1145 = vmatprep.subr.bf16.mxu0 0
    %1146 = vmatpush1.bf16.msra.mxu0 %v788
    %1147 = vmatprep.subr.bf16.mxu0 0
    %1148 = vmatpush1.bf16.msra.mxu0 %v787
    %1149 = vmatprep.subr.bf16.mxu0 0
    %1150 = vmatpush1.bf16.msra.mxu0 %v786
    %1151 = vmatprep.subr.bf16.mxu0 0
    %1152 = vmatpush1.bf16.msra.mxu0 %v785
    %1153 = vmatprep.subr.bf16.mxu0 0
    %1154 = vmatpush2.bf16.msra.mxu0 %v800
    %1155 = vmatprep.subr.bf16.mxu0 0
    %1156 = vmatpush2.bf16.msra.mxu0 %v799
    %1157 = vmatprep.subr.bf16.mxu0 0
    %1158 = vmatpush2.bf16.msra.mxu0 %v798
    %1159 = vmatprep.subr.bf16.mxu0 0
    %1160 = vmatpush2.bf16.msra.mxu0 %v797
    %1161 = vmatprep.subr.bf16.mxu0 0
    %1162 = vmatpush2.bf16.msra.mxu0 %v796
    %1163 = vmatprep.subr.bf16.mxu0 0
    %1164 = vmatpush2.bf16.msra.mxu0 %v795
    %1165 = vmatprep.subr.bf16.mxu0 0
    %1166 = vmatpush2.bf16.msra.mxu0 %v794
    %1167 = vmatprep.subr.bf16.mxu0 0
    %1168 = vmatpush2.bf16.msra.mxu0 %v793
    %1169 = vmatprep.mubr.bf16.mxu0 %v107
    %1170 = vmatmul.mubr.bf16.gmra.mxu0 %v106
    %v1171 = vpop.f32.mrf.mxu0
    %v1172 = vadd.f32 %v1132, %v1171
    %v1173 = vpop.f32.mrf.mxu0
    %v1174 = vpop.f32.mrf.mxu0
    %v1175 = vpop.f32.mrf.mxu0
    %1176 = vdwg.mxu0
    %1177 = vmatprep.subr.bf16.mxu0 0
    %1178 = vmatpush1.bf16.msra.mxu0 %v808
    %1179 = vmatprep.subr.bf16.mxu0 0
    %1180 = vmatpush1.bf16.msra.mxu0 %v807
    %1181 = vmatprep.subr.bf16.mxu0 0
    %1182 = vmatpush1.bf16.msra.mxu0 %v806
    %1183 = vmatprep.subr.bf16.mxu0 0
    %1184 = vmatpush1.bf16.msra.mxu0 %v805
    %1185 = vmatprep.subr.bf16.mxu0 0
    %1186 = vmatpush1.bf16.msra.mxu0 %v804
    %1187 = vmatprep.subr.bf16.mxu0 0
    %1188 = vmatpush1.bf16.msra.mxu0 %v803
    %1189 = vmatprep.subr.bf16.mxu0 0
    %1190 = vmatpush1.bf16.msra.mxu0 %v802
    %1191 = vmatprep.subr.bf16.mxu0 0
    %1192 = vmatpush1.bf16.msra.mxu0 %v801
    %1193 = vmatprep.subr.bf16.mxu0 0
    %1194 = vmatpush2.bf16.msra.mxu0 %v816
    %1195 = vmatprep.subr.bf16.mxu0 0
    %1196 = vmatpush2.bf16.msra.mxu0 %v815
    %1197 = vmatprep.subr.bf16.mxu0 0
    %1198 = vmatpush2.bf16.msra.mxu0 %v814
    %1199 = vmatprep.subr.bf16.mxu0 0
    %1200 = vmatpush2.bf16.msra.mxu0 %v813
    %1201 = vmatprep.subr.bf16.mxu0 0
    %1202 = vmatpush2.bf16.msra.mxu0 %v812
    %1203 = vmatprep.subr.bf16.mxu0 0
    %1204 = vmatpush2.bf16.msra.mxu0 %v811
    %1205 = vmatprep.subr.bf16.mxu0 0
    %1206 = vmatpush2.bf16.msra.mxu0 %v810
    %1207 = vmatprep.subr.bf16.mxu0 0
    %1208 = vmatpush2.bf16.msra.mxu0 %v809
    %1209 = vmatprep.mubr.bf16.mxu0 %v109
    %1210 = vmatmul.mubr.bf16.gmra.mxu0 %v108
    %v1211 = vpop.f32.mrf.mxu0
    %v1212 = vadd.f32 %v1172, %v1211
    %v1213 = vpop.f32.mrf.mxu0
    %v1214 = vpop.f32.mrf.mxu0
    %v1215 = vpop.f32.mrf.mxu0
    %1216 = vdwg.mxu0
    %1217 = vmatprep.subr.bf16.mxu0 0
    %1218 = vmatpush1.bf16.msra.mxu0 %v824
    %1219 = vmatprep.subr.bf16.mxu0 0
    %1220 = vmatpush1.bf16.msra.mxu0 %v823
    %1221 = vmatprep.subr.bf16.mxu0 0
    %1222 = vmatpush1.bf16.msra.mxu0 %v822
    %1223 = vmatprep.subr.bf16.mxu0 0
    %1224 = vmatpush1.bf16.msra.mxu0 %v821
    %1225 = vmatprep.subr.bf16.mxu0 0
    %1226 = vmatpush1.bf16.msra.mxu0 %v820
    %1227 = vmatprep.subr.bf16.mxu0 0
    %1228 = vmatpush1.bf16.msra.mxu0 %v819
    %1229 = vmatprep.subr.bf16.mxu0 0
    %1230 = vmatpush1.bf16.msra.mxu0 %v818
    %1231 = vmatprep.subr.bf16.mxu0 0
    %1232 = vmatpush1.bf16.msra.mxu0 %v817
    %1233 = vmatprep.subr.bf16.mxu0 0
    %1234 = vmatpush2.bf16.msra.mxu0 %v832
    %1235 = vmatprep.subr.bf16.mxu0 0
    %1236 = vmatpush2.bf16.msra.mxu0 %v831
    %1237 = vmatprep.subr.bf16.mxu0 0
    %1238 = vmatpush2.bf16.msra.mxu0 %v830
    %1239 = vmatprep.subr.bf16.mxu0 0
    %1240 = vmatpush2.bf16.msra.mxu0 %v829
    %1241 = vmatprep.subr.bf16.mxu0 0
    %1242 = vmatpush2.bf16.msra.mxu0 %v828
    %1243 = vmatprep.subr.bf16.mxu0 0
    %1244 = vmatpush2.bf16.msra.mxu0 %v827
    %1245 = vmatprep.subr.bf16.mxu0 0
    %1246 = vmatpush2.bf16.msra.mxu0 %v826
    %1247 = vmatprep.subr.bf16.mxu0 0
    %1248 = vmatpush2.bf16.msra.mxu0 %v825
    %1249 = vmatprep.mubr.bf16.mxu0 %v111
    %1250 = vmatmul.mubr.bf16.gmra.mxu0 %v110
    %v1251 = vpop.f32.mrf.mxu0
    %v1252 = vadd.f32 %v1212, %v1251
    %v1253 = vpop.f32.mrf.mxu0
    %v1254 = vpop.f32.mrf.mxu0
    %v1255 = vpop.f32.mrf.mxu0
    %1256 = vdwg.mxu0
    %1257 = vmatprep.subr.bf16.mxu0 0
    %1258 = vmatpush1.bf16.msra.mxu0 %v840
    %1259 = vmatprep.subr.bf16.mxu0 0
    %1260 = vmatpush1.bf16.msra.mxu0 %v839
    %1261 = vmatprep.subr.bf16.mxu0 0
    %1262 = vmatpush1.bf16.msra.mxu0 %v838
    %1263 = vmatprep.subr.bf16.mxu0 0
    %1264 = vmatpush1.bf16.msra.mxu0 %v837
    %1265 = vmatprep.subr.bf16.mxu0 0
    %1266 = vmatpush1.bf16.msra.mxu0 %v836
    %1267 = vmatprep.subr.bf16.mxu0 0
    %1268 = vmatpush1.bf16.msra.mxu0 %v835
    %1269 = vmatprep.subr.bf16.mxu0 0
    %1270 = vmatpush1.bf16.msra.mxu0 %v834
    %1271 = vmatprep.subr.bf16.mxu0 0
    %1272 = vmatpush1.bf16.msra.mxu0 %v833
    %1273 = vmatprep.subr.bf16.mxu0 0
    %1274 = vmatpush2.bf16.msra.mxu0 %v848
    %1275 = vmatprep.subr.bf16.mxu0 0
    %1276 = vmatpush2.bf16.msra.mxu0 %v847
    %1277 = vmatprep.subr.bf16.mxu0 0
    %1278 = vmatpush2.bf16.msra.mxu0 %v846
    %1279 = vmatprep.subr.bf16.mxu0 0
    %1280 = vmatpush2.bf16.msra.mxu0 %v845
    %1281 = vmatprep.subr.bf16.mxu0 0
    %1282 = vmatpush2.bf16.msra.mxu0 %v844
    %1283 = vmatprep.subr.bf16.mxu0 0
    %1284 = vmatpush2.bf16.msra.mxu0 %v843
    %1285 = vmatprep.subr.bf16.mxu0 0
    %1286 = vmatpush2.bf16.msra.mxu0 %v842
    %1287 = vmatprep.subr.bf16.mxu0 0
    %1288 = vmatpush2.bf16.msra.mxu0 %v841
    %1289 = vmatprep.mubr.bf16.mxu0 %v113
    %1290 = vmatmul.mubr.bf16.gmra.mxu0 %v112
    %v1291 = vpop.f32.mrf.mxu0
    %v1292 = vadd.f32 %v1252, %v1291
    %v1293 = vpop.f32.mrf.mxu0
    %v1294 = vpop.f32.mrf.mxu0
    %v1295 = vpop.f32.mrf.mxu0
    %1296 = vdwg.mxu0
    %1297 = vmatprep.subr.bf16.mxu0 0
    %1298 = vmatpush1.bf16.msra.mxu0 %v856
    %1299 = vmatprep.subr.bf16.mxu0 0
    %1300 = vmatpush1.bf16.msra.mxu0 %v855
    %1301 = vmatprep.subr.bf16.mxu0 0
    %1302 = vmatpush1.bf16.msra.mxu0 %v854
    %1303 = vmatprep.subr.bf16.mxu0 0
    %1304 = vmatpush1.bf16.msra.mxu0 %v853
    %1305 = vmatprep.subr.bf16.mxu0 0
    %1306 = vmatpush1.bf16.msra.mxu0 %v852
    %1307 = vmatprep.subr.bf16.mxu0 0
    %1308 = vmatpush1.bf16.msra.mxu0 %v851
    %1309 = vmatprep.subr.bf16.mxu0 0
    %1310 = vmatpush1.bf16.msra.mxu0 %v850
    %1311 = vmatprep.subr.bf16.mxu0 0
    %1312 = vmatpush1.bf16.msra.mxu0 %v849
    %1313 = vmatprep.subr.bf16.mxu0 0
    %1314 = vmatpush2.bf16.msra.mxu0 %v864
    %1315 = vmatprep.subr.bf16.mxu0 0
    %1316 = vmatpush2.bf16.msra.mxu0 %v863
    %1317 = vmatprep.subr.bf16.mxu0 0
    %1318 = vmatpush2.bf16.msra.mxu0 %v862
    %1319 = vmatprep.subr.bf16.mxu0 0
    %1320 = vmatpush2.bf16.msra.mxu0 %v861
    %1321 = vmatprep.subr.bf16.mxu0 0
    %1322 = vmatpush2.bf16.msra.mxu0 %v860
    %1323 = vmatprep.subr.bf16.mxu0 0
    %1324 = vmatpush2.bf16.msra.mxu0 %v859
    %1325 = vmatprep.subr.bf16.mxu0 0
    %1326 = vmatpush2.bf16.msra.mxu0 %v858
    %1327 = vmatprep.subr.bf16.mxu0 0
    %1328 = vmatpush2.bf16.msra.mxu0 %v857
    %1329 = vmatprep.mubr.bf16.mxu0 %v115
    %1330 = vmatmul.mubr.bf16.gmra.mxu0 %v114
    %v1331 = vpop.f32.mrf.mxu0
    %v1332 = vadd.f32 %v1292, %v1331
    %v1333 = vpop.f32.mrf.mxu0
    %v1334 = vpop.f32.mrf.mxu0
    %v1335 = vpop.f32.mrf.mxu0
    %1336 = vdwg.mxu0
    %1337 = vmatprep.subr.bf16.mxu0 0
    %1338 = vmatpush1.bf16.msra.mxu0 %v872
    %1339 = vmatprep.subr.bf16.mxu0 0
    %1340 = vmatpush1.bf16.msra.mxu0 %v871
    %1341 = vmatprep.subr.bf16.mxu0 0
    %1342 = vmatpush1.bf16.msra.mxu0 %v870
    %1343 = vmatprep.subr.bf16.mxu0 0
    %1344 = vmatpush1.bf16.msra.mxu0 %v869
    %1345 = vmatprep.subr.bf16.mxu0 0
    %1346 = vmatpush1.bf16.msra.mxu0 %v868
    %1347 = vmatprep.subr.bf16.mxu0 0
    %1348 = vmatpush1.bf16.msra.mxu0 %v867
    %1349 = vmatprep.subr.bf16.mxu0 0
    %1350 = vmatpush1.bf16.msra.mxu0 %v866
    %1351 = vmatprep.subr.bf16.mxu0 0
    %1352 = vmatpush1.bf16.msra.mxu0 %v865
    %1353 = vmatprep.subr.bf16.mxu0 0
    %1354 = vmatpush2.bf16.msra.mxu0 %v880
    %1355 = vmatprep.subr.bf16.mxu0 0
    %1356 = vmatpush2.bf16.msra.mxu0 %v879
    %1357 = vmatprep.subr.bf16.mxu0 0
    %1358 = vmatpush2.bf16.msra.mxu0 %v878
    %1359 = vmatprep.subr.bf16.mxu0 0
    %1360 = vmatpush2.bf16.msra.mxu0 %v877
    %1361 = vmatprep.subr.bf16.mxu0 0
    %1362 = vmatpush2.bf16.msra.mxu0 %v876
    %1363 = vmatprep.subr.bf16.mxu0 0
    %1364 = vmatpush2.bf16.msra.mxu0 %v875
    %1365 = vmatprep.subr.bf16.mxu0 0
    %1366 = vmatpush2.bf16.msra.mxu0 %v874
    %1367 = vmatprep.subr.bf16.mxu0 0
    %1368 = vmatpush2.bf16.msra.mxu0 %v873
    %1369 = vmatprep.mubr.bf16.mxu0 %v117
    %1370 = vmatmul.mubr.bf16.gmra.mxu0 %v116
    %v1371 = vpop.f32.mrf.mxu0
    %v1372 = vadd.f32 %v1332, %v1371
    %v1373 = vpop.f32.mrf.mxu0
    %v1374 = vpop.f32.mrf.mxu0
    %v1375 = vpop.f32.mrf.mxu0
    %1376 = vdwg.mxu0
    %1377 = vmatprep.subr.bf16.mxu0 0
    %1378 = vmatpush1.bf16.msra.mxu0 %v888
    %1379 = vmatprep.subr.bf16.mxu0 0
    %1380 = vmatpush1.bf16.msra.mxu0 %v887
    %1381 = vmatprep.subr.bf16.mxu0 0
    %1382 = vmatpush1.bf16.msra.mxu0 %v886
    %1383 = vmatprep.subr.bf16.mxu0 0
    %1384 = vmatpush1.bf16.msra.mxu0 %v885
    %1385 = vmatprep.subr.bf16.mxu0 0
    %1386 = vmatpush1.bf16.msra.mxu0 %v884
    %1387 = vmatprep.subr.bf16.mxu0 0
    %1388 = vmatpush1.bf16.msra.mxu0 %v883
    %1389 = vmatprep.subr.bf16.mxu0 0
    %1390 = vmatpush1.bf16.msra.mxu0 %v882
    %1391 = vmatprep.subr.bf16.mxu0 0
    %1392 = vmatpush1.bf16.msra.mxu0 %v881
    %1393 = vmatprep.subr.bf16.mxu0 0
    %1394 = vmatpush2.bf16.msra.mxu0 %v896
    %1395 = vmatprep.subr.bf16.mxu0 0
    %1396 = vmatpush2.bf16.msra.mxu0 %v895
    %1397 = vmatprep.subr.bf16.mxu0 0
    %1398 = vmatpush2.bf16.msra.mxu0 %v894
    %1399 = vmatprep.subr.bf16.mxu0 0
    %1400 = vmatpush2.bf16.msra.mxu0 %v893
    %1401 = vmatprep.subr.bf16.mxu0 0
    %1402 = vmatpush2.bf16.msra.mxu0 %v892
    %1403 = vmatprep.subr.bf16.mxu0 0
    %1404 = vmatpush2.bf16.msra.mxu0 %v891
    %1405 = vmatprep.subr.bf16.mxu0 0
    %1406 = vmatpush2.bf16.msra.mxu0 %v890
    %1407 = vmatprep.subr.bf16.mxu0 0
    %1408 = vmatpush2.bf16.msra.mxu0 %v889
    %1409 = vmatprep.mubr.bf16.mxu0 %v119
    %1410 = vmatmul.mubr.bf16.gmra.mxu0 %v118
    %v1411 = vpop.f32.mrf.mxu0
    %v1412 = vadd.f32 %v1372, %v1411
    %v1413 = vpop.f32.mrf.mxu0
    %v1414 = vpop.f32.mrf.mxu0
    %v1415 = vpop.f32.mrf.mxu0
    %1416 = vdwg.mxu0
    %1417 = vmatprep.subr.bf16.mxu0 0
    %1418 = vmatpush1.bf16.msra.mxu0 %v904
    %1419 = vmatprep.subr.bf16.mxu0 0
    %1420 = vmatpush1.bf16.msra.mxu0 %v903
    %1421 = vmatprep.subr.bf16.mxu0 0
    %1422 = vmatpush1.bf16.msra.mxu0 %v902
    %1423 = vmatprep.subr.bf16.mxu0 0
    %1424 = vmatpush1.bf16.msra.mxu0 %v901
    %1425 = vmatprep.subr.bf16.mxu0 0
    %1426 = vmatpush1.bf16.msra.mxu0 %v900
    %1427 = vmatprep.subr.bf16.mxu0 0
    %1428 = vmatpush1.bf16.msra.mxu0 %v899
    %1429 = vmatprep.subr.bf16.mxu0 0
    %1430 = vmatpush1.bf16.msra.mxu0 %v898
    %1431 = vmatprep.subr.bf16.mxu0 0
    %1432 = vmatpush1.bf16.msra.mxu0 %v897
    %1433 = vmatprep.subr.bf16.mxu0 0
    %1434 = vmatpush2.bf16.msra.mxu0 %v912
    %1435 = vmatprep.subr.bf16.mxu0 0
    %1436 = vmatpush2.bf16.msra.mxu0 %v911
    %1437 = vmatprep.subr.bf16.mxu0 0
    %1438 = vmatpush2.bf16.msra.mxu0 %v910
    %1439 = vmatprep.subr.bf16.mxu0 0
    %1440 = vmatpush2.bf16.msra.mxu0 %v909
    %1441 = vmatprep.subr.bf16.mxu0 0
    %1442 = vmatpush2.bf16.msra.mxu0 %v908
    %1443 = vmatprep.subr.bf16.mxu0 0
    %1444 = vmatpush2.bf16.msra.mxu0 %v907
    %1445 = vmatprep.subr.bf16.mxu0 0
    %1446 = vmatpush2.bf16.msra.mxu0 %v906
    %1447 = vmatprep.subr.bf16.mxu0 0
    %1448 = vmatpush2.bf16.msra.mxu0 %v905
    %1449 = vmatprep.mubr.bf16.mxu0 %v121
    %1450 = vmatmul.mubr.bf16.gmra.mxu0 %v120
    %v1451 = vpop.f32.mrf.mxu0
    %v1452 = vadd.f32 %v1412, %v1451
    %v1453 = vpop.f32.mrf.mxu0
    %v1454 = vpop.f32.mrf.mxu0
    %v1455 = vpop.f32.mrf.mxu0
    %1456 = vdwg.mxu0
    %1457 = vmatprep.subr.bf16.mxu0 0
    %1458 = vmatpush1.bf16.msra.mxu0 %v920
    %1459 = vmatprep.subr.bf16.mxu0 0
    %1460 = vmatpush1.bf16.msra.mxu0 %v919
    %1461 = vmatprep.subr.bf16.mxu0 0
    %1462 = vmatpush1.bf16.msra.mxu0 %v918
    %1463 = vmatprep.subr.bf16.mxu0 0
    %1464 = vmatpush1.bf16.msra.mxu0 %v917
    %1465 = vmatprep.subr.bf16.mxu0 0
    %1466 = vmatpush1.bf16.msra.mxu0 %v916
    %1467 = vmatprep.subr.bf16.mxu0 0
    %1468 = vmatpush1.bf16.msra.mxu0 %v915
    %1469 = vmatprep.subr.bf16.mxu0 0
    %1470 = vmatpush1.bf16.msra.mxu0 %v914
    %1471 = vmatprep.subr.bf16.mxu0 0
    %1472 = vmatpush1.bf16.msra.mxu0 %v913
    %1473 = vmatprep.subr.bf16.mxu0 0
    %1474 = vmatpush2.bf16.msra.mxu0 %v928
    %1475 = vmatprep.subr.bf16.mxu0 0
    %1476 = vmatpush2.bf16.msra.mxu0 %v927
    %1477 = vmatprep.subr.bf16.mxu0 0
    %1478 = vmatpush2.bf16.msra.mxu0 %v926
    %1479 = vmatprep.subr.bf16.mxu0 0
    %1480 = vmatpush2.bf16.msra.mxu0 %v925
    %1481 = vmatprep.subr.bf16.mxu0 0
    %1482 = vmatpush2.bf16.msra.mxu0 %v924
    %1483 = vmatprep.subr.bf16.mxu0 0
    %1484 = vmatpush2.bf16.msra.mxu0 %v923
    %1485 = vmatprep.subr.bf16.mxu0 0
    %1486 = vmatpush2.bf16.msra.mxu0 %v922
    %1487 = vmatprep.subr.bf16.mxu0 0
    %1488 = vmatpush2.bf16.msra.mxu0 %v921
    %1489 = vmatprep.mubr.bf16.mxu0 %v123
    %1490 = vmatmul.mubr.bf16.gmra.mxu0 %v122
    %v1491 = vpop.f32.mrf.mxu0
    %v1492 = vadd.f32 %v1452, %v1491
    %v1493 = vpop.f32.mrf.mxu0
    %v1494 = vpop.f32.mrf.mxu0
    %v1495 = vpop.f32.mrf.mxu0
    %1496 = vdwg.mxu0
    %1497 = vmatprep.subr.bf16.mxu0 0
    %1498 = vmatpush1.bf16.msra.mxu0 %v936
    %1499 = vmatprep.subr.bf16.mxu0 0
    %1500 = vmatpush1.bf16.msra.mxu0 %v935
    %1501 = vmatprep.subr.bf16.mxu0 0
    %1502 = vmatpush1.bf16.msra.mxu0 %v934
    %1503 = vmatprep.subr.bf16.mxu0 0
    %1504 = vmatpush1.bf16.msra.mxu0 %v933
    %1505 = vmatprep.subr.bf16.mxu0 0
    %1506 = vmatpush1.bf16.msra.mxu0 %v932
    %1507 = vmatprep.subr.bf16.mxu0 0
    %1508 = vmatpush1.bf16.msra.mxu0 %v931
    %1509 = vmatprep.subr.bf16.mxu0 0
    %1510 = vmatpush1.bf16.msra.mxu0 %v930
    %1511 = vmatprep.subr.bf16.mxu0 0
    %1512 = vmatpush1.bf16.msra.mxu0 %v929
    %1513 = vmatprep.subr.bf16.mxu0 0
    %1514 = vmatpush2.bf16.msra.mxu0 %v944
    %1515 = vmatprep.subr.bf16.mxu0 0
    %1516 = vmatpush2.bf16.msra.mxu0 %v943
    %1517 = vmatprep.subr.bf16.mxu0 0
    %1518 = vmatpush2.bf16.msra.mxu0 %v942
    %1519 = vmatprep.subr.bf16.mxu0 0
    %1520 = vmatpush2.bf16.msra.mxu0 %v941
    %1521 = vmatprep.subr.bf16.mxu0 0
    %1522 = vmatpush2.bf16.msra.mxu0 %v940
    %1523 = vmatprep.subr.bf16.mxu0 0
    %1524 = vmatpush2.bf16.msra.mxu0 %v939
    %1525 = vmatprep.subr.bf16.mxu0 0
    %1526 = vmatpush2.bf16.msra.mxu0 %v938
    %1527 = vmatprep.subr.bf16.mxu0 0
    %1528 = vmatpush2.bf16.msra.mxu0 %v937
    %1529 = vmatprep.mubr.bf16.mxu0 %v125
    %1530 = vmatmul.mubr.bf16.gmra.mxu0 %v124
    %v1531 = vpop.f32.mrf.mxu0
    %v1532 = vadd.f32 %v1492, %v1531
    %v1533 = vpop.f32.mrf.mxu0
    %v1534 = vpop.f32.mrf.mxu0
    %v1535 = vpop.f32.mrf.mxu0
    %1536 = vdwg.mxu0
    %1537 = vmatprep.subr.bf16.mxu0 0
    %1538 = vmatpush1.bf16.msra.mxu0 %v952
    %1539 = vmatprep.subr.bf16.mxu0 0
    %1540 = vmatpush1.bf16.msra.mxu0 %v951
    %1541 = vmatprep.subr.bf16.mxu0 0
    %1542 = vmatpush1.bf16.msra.mxu0 %v950
    %1543 = vmatprep.subr.bf16.mxu0 0
    %1544 = vmatpush1.bf16.msra.mxu0 %v949
    %1545 = vmatprep.subr.bf16.mxu0 0
    %1546 = vmatpush1.bf16.msra.mxu0 %v948
    %1547 = vmatprep.subr.bf16.mxu0 0
    %1548 = vmatpush1.bf16.msra.mxu0 %v947
    %1549 = vmatprep.subr.bf16.mxu0 0
    %1550 = vmatpush1.bf16.msra.mxu0 %v946
    %1551 = vmatprep.subr.bf16.mxu0 0
    %1552 = vmatpush1.bf16.msra.mxu0 %v945
    %1553 = vmatprep.subr.bf16.mxu0 0
    %1554 = vmatpush2.bf16.msra.mxu0 %v960
    %1555 = vmatprep.subr.bf16.mxu0 0
    %1556 = vmatpush2.bf16.msra.mxu0 %v959
    %1557 = vmatprep.subr.bf16.mxu0 0
    %1558 = vmatpush2.bf16.msra.mxu0 %v958
    %1559 = vmatprep.subr.bf16.mxu0 0
    %1560 = vmatpush2.bf16.msra.mxu0 %v957
    %1561 = vmatprep.subr.bf16.mxu0 0
    %1562 = vmatpush2.bf16.msra.mxu0 %v956
    %1563 = vmatprep.subr.bf16.mxu0 0
    %1564 = vmatpush2.bf16.msra.mxu0 %v955
    %1565 = vmatprep.subr.bf16.mxu0 0
    %1566 = vmatpush2.bf16.msra.mxu0 %v954
    %1567 = vmatprep.subr.bf16.mxu0 0
    %1568 = vmatpush2.bf16.msra.mxu0 %v953
    %1569 = vmatprep.mubr.bf16.mxu0 %v127
    %1570 = vmatmul.mubr.bf16.gmra.mxu0 %v126
    %v1571 = vpop.f32.mrf.mxu0
    %v1572 = vadd.f32 %v1532, %v1571
    %v1573 = vpop.f32.mrf.mxu0
    %v1574 = vpop.f32.mrf.mxu0
    %v1575 = vpop.f32.mrf.mxu0
    %1576 = vdwg.mxu0
    %1577 = vmatprep.subr.bf16.mxu0 0
    %1578 = vmatpush1.bf16.msra.mxu0 %v968
    %1579 = vmatprep.subr.bf16.mxu0 0
    %1580 = vmatpush1.bf16.msra.mxu0 %v967
    %1581 = vmatprep.subr.bf16.mxu0 0
    %1582 = vmatpush1.bf16.msra.mxu0 %v966
    %1583 = vmatprep.subr.bf16.mxu0 0
    %1584 = vmatpush1.bf16.msra.mxu0 %v965
    %1585 = vmatprep.subr.bf16.mxu0 0
    %1586 = vmatpush1.bf16.msra.mxu0 %v964
    %1587 = vmatprep.subr.bf16.mxu0 0
    %1588 = vmatpush1.bf16.msra.mxu0 %v963
    %1589 = vmatprep.subr.bf16.mxu0 0
    %1590 = vmatpush1.bf16.msra.mxu0 %v962
    %1591 = vmatprep.subr.bf16.mxu0 0
    %1592 = vmatpush1.bf16.msra.mxu0 %v961
    %1593 = vmatprep.subr.bf16.mxu0 0
    %1594 = vmatpush2.bf16.msra.mxu0 %v976
    %1595 = vmatprep.subr.bf16.mxu0 0
    %1596 = vmatpush2.bf16.msra.mxu0 %v975
    %1597 = vmatprep.subr.bf16.mxu0 0
    %1598 = vmatpush2.bf16.msra.mxu0 %v974
    %1599 = vmatprep.subr.bf16.mxu0 0
    %1600 = vmatpush2.bf16.msra.mxu0 %v973
    %1601 = vmatprep.subr.bf16.mxu0 0
    %1602 = vmatpush2.bf16.msra.mxu0 %v972
    %1603 = vmatprep.subr.bf16.mxu0 0
    %1604 = vmatpush2.bf16.msra.mxu0 %v971
    %1605 = vmatprep.subr.bf16.mxu0 0
    %1606 = vmatpush2.bf16.msra.mxu0 %v970
    %1607 = vmatprep.subr.bf16.mxu0 0
    %1608 = vmatpush2.bf16.msra.mxu0 %v969
    %1609 = vmatprep.mubr.bf16.mxu0 %v129
    %1610 = vmatmul.mubr.bf16.gmra.mxu0 %v128
    %v1611 = vpop.f32.mrf.mxu0
    %v1612 = vadd.f32 %v1572, %v1611
    %v1613 = vpop.f32.mrf.mxu0
    %v1614 = vpop.f32.mrf.mxu0
    %v1615 = vpop.f32.mrf.mxu0
    %1616 = vdwg.mxu0
    %1617 = vmatprep.subr.bf16.mxu0 0
    %1618 = vmatpush1.bf16.msra.mxu0 %v984
    %1619 = vmatprep.subr.bf16.mxu0 0
    %1620 = vmatpush1.bf16.msra.mxu0 %v983
    %1621 = vmatprep.subr.bf16.mxu0 0
    %1622 = vmatpush1.bf16.msra.mxu0 %v982
    %1623 = vmatprep.subr.bf16.mxu0 0
    %1624 = vmatpush1.bf16.msra.mxu0 %v981
    %1625 = vmatprep.subr.bf16.mxu0 0
    %1626 = vmatpush1.bf16.msra.mxu0 %v980
    %1627 = vmatprep.subr.bf16.mxu0 0
    %1628 = vmatpush1.bf16.msra.mxu0 %v979
    %1629 = vmatprep.subr.bf16.mxu0 0
    %1630 = vmatpush1.bf16.msra.mxu0 %v978
    %1631 = vmatprep.subr.bf16.mxu0 0
    %1632 = vmatpush1.bf16.msra.mxu0 %v977
    %1633 = vmatprep.subr.bf16.mxu0 0
    %1634 = vmatpush2.bf16.msra.mxu0 %v992
    %1635 = vmatprep.subr.bf16.mxu0 0
    %1636 = vmatpush2.bf16.msra.mxu0 %v991
    %1637 = vmatprep.subr.bf16.mxu0 0
    %1638 = vmatpush2.bf16.msra.mxu0 %v990
    %1639 = vmatprep.subr.bf16.mxu0 0
    %1640 = vmatpush2.bf16.msra.mxu0 %v989
    %1641 = vmatprep.subr.bf16.mxu0 0
    %1642 = vmatpush2.bf16.msra.mxu0 %v988
    %1643 = vmatprep.subr.bf16.mxu0 0
    %1644 = vmatpush2.bf16.msra.mxu0 %v987
    %1645 = vmatprep.subr.bf16.mxu0 0
    %1646 = vmatpush2.bf16.msra.mxu0 %v986
    %1647 = vmatprep.subr.bf16.mxu0 0
    %1648 = vmatpush2.bf16.msra.mxu0 %v985
    %1649 = vmatprep.mubr.bf16.mxu0 %v131
    %1650 = vmatmul.mubr.bf16.gmra.mxu0 %v130
    %v1651 = vpop.f32.mrf.mxu0
    %v1652 = vadd.f32 %v1612, %v1651
    %v1653 = vpop.f32.mrf.mxu0
    %v1654 = vpop.f32.mrf.mxu0
    %v1655 = vpop.f32.mrf.mxu0
    %1656 = vdwg.mxu0
    %1657 = vmatprep.subr.bf16.mxu0 0
    %1658 = vmatpush1.bf16.msra.mxu0 %v1000
    %1659 = vmatprep.subr.bf16.mxu0 0
    %1660 = vmatpush1.bf16.msra.mxu0 %v999
    %1661 = vmatprep.subr.bf16.mxu0 0
    %1662 = vmatpush1.bf16.msra.mxu0 %v998
    %1663 = vmatprep.subr.bf16.mxu0 0
    %1664 = vmatpush1.bf16.msra.mxu0 %v997
    %1665 = vmatprep.subr.bf16.mxu0 0
    %1666 = vmatpush1.bf16.msra.mxu0 %v996
    %1667 = vmatprep.subr.bf16.mxu0 0
    %1668 = vmatpush1.bf16.msra.mxu0 %v995
    %1669 = vmatprep.subr.bf16.mxu0 0
    %1670 = vmatpush1.bf16.msra.mxu0 %v994
    %1671 = vmatprep.subr.bf16.mxu0 0
    %1672 = vmatpush1.bf16.msra.mxu0 %v993
    %1673 = vmatprep.subr.bf16.mxu0 0
    %1674 = vmatpush2.bf16.msra.mxu0 %v1008
    %1675 = vmatprep.subr.bf16.mxu0 0
    %1676 = vmatpush2.bf16.msra.mxu0 %v1007
    %1677 = vmatprep.subr.bf16.mxu0 0
    %1678 = vmatpush2.bf16.msra.mxu0 %v1006
    %1679 = vmatprep.subr.bf16.mxu0 0
    %1680 = vmatpush2.bf16.msra.mxu0 %v1005
    %1681 = vmatprep.subr.bf16.mxu0 0
    %1682 = vmatpush2.bf16.msra.mxu0 %v1004
    %1683 = vmatprep.subr.bf16.mxu0 0
    %1684 = vmatpush2.bf16.msra.mxu0 %v1003
    %1685 = vmatprep.subr.bf16.mxu0 0
    %1686 = vmatpush2.bf16.msra.mxu0 %v1002
    %1687 = vmatprep.subr.bf16.mxu0 0
    %1688 = vmatpush2.bf16.msra.mxu0 %v1001
    %1689 = vmatprep.mubr.bf16.mxu0 %v133
    %1690 = vmatmul.mubr.bf16.gmra.mxu0 %v132
    %v1691 = vpop.f32.mrf.mxu0
    %v1692 = vadd.f32 %v1652, %v1691
    %v1693 = vpop.f32.mrf.mxu0
    %v1694 = vpop.f32.mrf.mxu0
    %v1695 = vpop.f32.mrf.mxu0
    %1696 = vdwg.mxu0
    %1697 = vmatprep.subr.bf16.mxu0 0
    %1698 = vmatpush1.bf16.msra.mxu0 %v1016
    %1699 = vmatprep.subr.bf16.mxu0 0
    %1700 = vmatpush1.bf16.msra.mxu0 %v1015
    %1701 = vmatprep.subr.bf16.mxu0 0
    %1702 = vmatpush1.bf16.msra.mxu0 %v1014
    %1703 = vmatprep.subr.bf16.mxu0 0
    %1704 = vmatpush1.bf16.msra.mxu0 %v1013
    %1705 = vmatprep.subr.bf16.mxu0 0
    %1706 = vmatpush1.bf16.msra.mxu0 %v1012
    %1707 = vmatprep.subr.bf16.mxu0 0
    %1708 = vmatpush1.bf16.msra.mxu0 %v1011
    %1709 = vmatprep.subr.bf16.mxu0 0
    %1710 = vmatpush1.bf16.msra.mxu0 %v1010
    %1711 = vmatprep.subr.bf16.mxu0 0
    %1712 = vmatpush1.bf16.msra.mxu0 %v1009
    %1713 = vmatprep.subr.bf16.mxu0 0
    %1714 = vmatpush2.bf16.msra.mxu0 %v1024
    %1715 = vmatprep.subr.bf16.mxu0 0
    %1716 = vmatpush2.bf16.msra.mxu0 %v1023
    %1717 = vmatprep.subr.bf16.mxu0 0
    %1718 = vmatpush2.bf16.msra.mxu0 %v1022
    %1719 = vmatprep.subr.bf16.mxu0 0
    %1720 = vmatpush2.bf16.msra.mxu0 %v1021
    %1721 = vmatprep.subr.bf16.mxu0 0
    %1722 = vmatpush2.bf16.msra.mxu0 %v1020
    %1723 = vmatprep.subr.bf16.mxu0 0
    %1724 = vmatpush2.bf16.msra.mxu0 %v1019
    %1725 = vmatprep.subr.bf16.mxu0 0
    %1726 = vmatpush2.bf16.msra.mxu0 %v1018
    %1727 = vmatprep.subr.bf16.mxu0 0
    %1728 = vmatpush2.bf16.msra.mxu0 %v1017
    %1729 = vmatprep.mubr.bf16.mxu0 %v135
    %1730 = vmatmul.mubr.bf16.gmra.mxu0 %v134
    %v1731 = vpop.f32.mrf.mxu0
    %v1732 = vadd.f32 %v1692, %v1731
    %v1733 = vpop.f32.mrf.mxu0
    %v1734 = vpop.f32.mrf.mxu0
    %v1735 = vpop.f32.mrf.mxu0
    %1736 = vdwg.mxu0
    %1737 = vmatprep.subr.bf16.mxu0 0
    %1738 = vmatpush1.bf16.msra.mxu0 %v1032
    %1739 = vmatprep.subr.bf16.mxu0 0
    %1740 = vmatpush1.bf16.msra.mxu0 %v1031
    %1741 = vmatprep.subr.bf16.mxu0 0
    %1742 = vmatpush1.bf16.msra.mxu0 %v1030
    %1743 = vmatprep.subr.bf16.mxu0 0
    %1744 = vmatpush1.bf16.msra.mxu0 %v1029
    %1745 = vmatprep.subr.bf16.mxu0 0
    %1746 = vmatpush1.bf16.msra.mxu0 %v1028
    %1747 = vmatprep.subr.bf16.mxu0 0
    %1748 = vmatpush1.bf16.msra.mxu0 %v1027
    %1749 = vmatprep.subr.bf16.mxu0 0
    %1750 = vmatpush1.bf16.msra.mxu0 %v1026
    %1751 = vmatprep.subr.bf16.mxu0 0
    %1752 = vmatpush1.bf16.msra.mxu0 %v1025
    %1753 = vmatprep.subr.bf16.mxu0 0
    %1754 = vmatpush2.bf16.msra.mxu0 %v1040
    %1755 = vmatprep.subr.bf16.mxu0 0
    %1756 = vmatpush2.bf16.msra.mxu0 %v1039
    %1757 = vmatprep.subr.bf16.mxu0 0
    %1758 = vmatpush2.bf16.msra.mxu0 %v1038
    %1759 = vmatprep.subr.bf16.mxu0 0
    %1760 = vmatpush2.bf16.msra.mxu0 %v1037
    %1761 = vmatprep.subr.bf16.mxu0 0
    %1762 = vmatpush2.bf16.msra.mxu0 %v1036
    %1763 = vmatprep.subr.bf16.mxu0 0
    %1764 = vmatpush2.bf16.msra.mxu0 %v1035
    %1765 = vmatprep.subr.bf16.mxu0 0
    %1766 = vmatpush2.bf16.msra.mxu0 %v1034
    %1767 = vmatprep.subr.bf16.mxu0 0
    %1768 = vmatpush2.bf16.msra.mxu0 %v1033
    %1769 = vmatprep.mubr.bf16.mxu0 %v137
    %1770 = vmatmul.mubr.bf16.gmra.mxu0 %v136
    %v1771 = vpop.f32.mrf.mxu0
    %v1772 = vadd.f32 %v1732, %v1771
    %v1773 = vpop.f32.mrf.mxu0
    %v1774 = vpop.f32.mrf.mxu0
    %v1775 = vpop.f32.mrf.mxu0
    %1776 = vdwg.mxu0
    %1777 = vmatprep.subr.bf16.mxu0 0
    %1778 = vmatpush1.bf16.msra.mxu0 %v1048
    %1779 = vmatprep.subr.bf16.mxu0 0
    %1780 = vmatpush1.bf16.msra.mxu0 %v1047
    %1781 = vmatprep.subr.bf16.mxu0 0
    %1782 = vmatpush1.bf16.msra.mxu0 %v1046
    %1783 = vmatprep.subr.bf16.mxu0 0
    %1784 = vmatpush1.bf16.msra.mxu0 %v1045
    %1785 = vmatprep.subr.bf16.mxu0 0
    %1786 = vmatpush1.bf16.msra.mxu0 %v1044
    %1787 = vmatprep.subr.bf16.mxu0 0
    %1788 = vmatpush1.bf16.msra.mxu0 %v1043
    %1789 = vmatprep.subr.bf16.mxu0 0
    %1790 = vmatpush1.bf16.msra.mxu0 %v1042
    %1791 = vmatprep.subr.bf16.mxu0 0
    %1792 = vmatpush1.bf16.msra.mxu0 %v1041
    %1793 = vmatprep.subr.bf16.mxu0 0
    %1794 = vmatpush2.bf16.msra.mxu0 %v1056
    %1795 = vmatprep.subr.bf16.mxu0 0
    %1796 = vmatpush2.bf16.msra.mxu0 %v1055
    %1797 = vmatprep.subr.bf16.mxu0 0
    %1798 = vmatpush2.bf16.msra.mxu0 %v1054
    %1799 = vmatprep.subr.bf16.mxu0 0
    %1800 = vmatpush2.bf16.msra.mxu0 %v1053
    %1801 = vmatprep.subr.bf16.mxu0 0
    %1802 = vmatpush2.bf16.msra.mxu0 %v1052
    %1803 = vmatprep.subr.bf16.mxu0 0
    %1804 = vmatpush2.bf16.msra.mxu0 %v1051
    %1805 = vmatprep.subr.bf16.mxu0 0
    %1806 = vmatpush2.bf16.msra.mxu0 %v1050
    %1807 = vmatprep.subr.bf16.mxu0 0
    %1808 = vmatpush2.bf16.msra.mxu0 %v1049
    %1809 = vmatprep.mubr.bf16.mxu0 %v139
    %1810 = vmatmul.mubr.bf16.gmra.mxu0 %v138
    %v1811 = vpop.f32.mrf.mxu0
    %v1812 = vadd.f32 %v1772, %v1811
    %v1813 = vpop.f32.mrf.mxu0
    %v1814 = vpop.f32.mrf.mxu0
    %v1815 = vpop.f32.mrf.mxu0
    %1816 = vdwg.mxu0
    %1817 = vmatprep.subr.bf16.mxu0 0
    %1818 = vmatpush1.bf16.msra.mxu0 %v1064
    %1819 = vmatprep.subr.bf16.mxu0 0
    %1820 = vmatpush1.bf16.msra.mxu0 %v1063
    %1821 = vmatprep.subr.bf16.mxu0 0
    %1822 = vmatpush1.bf16.msra.mxu0 %v1062
    %1823 = vmatprep.subr.bf16.mxu0 0
    %1824 = vmatpush1.bf16.msra.mxu0 %v1061
    %1825 = vmatprep.subr.bf16.mxu0 0
    %1826 = vmatpush1.bf16.msra.mxu0 %v1060
    %1827 = vmatprep.subr.bf16.mxu0 0
    %1828 = vmatpush1.bf16.msra.mxu0 %v1059
    %1829 = vmatprep.subr.bf16.mxu0 0
    %1830 = vmatpush1.bf16.msra.mxu0 %v1058
    %1831 = vmatprep.subr.bf16.mxu0 0
    %1832 = vmatpush1.bf16.msra.mxu0 %v1057
    %1833 = vmatprep.subr.bf16.mxu0 0
    %1834 = vmatpush2.bf16.msra.mxu0 %v1072
    %1835 = vmatprep.subr.bf16.mxu0 0
    %1836 = vmatpush2.bf16.msra.mxu0 %v1071
    %1837 = vmatprep.subr.bf16.mxu0 0
    %1838 = vmatpush2.bf16.msra.mxu0 %v1070
    %1839 = vmatprep.subr.bf16.mxu0 0
    %1840 = vmatpush2.bf16.msra.mxu0 %v1069
    %1841 = vmatprep.subr.bf16.mxu0 0
    %1842 = vmatpush2.bf16.msra.mxu0 %v1068
    %1843 = vmatprep.subr.bf16.mxu0 0
    %1844 = vmatpush2.bf16.msra.mxu0 %v1067
    %1845 = vmatprep.subr.bf16.mxu0 0
    %1846 = vmatpush2.bf16.msra.mxu0 %v1066
    %1847 = vmatprep.subr.bf16.mxu0 0
    %1848 = vmatpush2.bf16.msra.mxu0 %v1065
    %1849 = vmatprep.mubr.bf16.mxu0 %v141
    %1850 = vmatmul.mubr.bf16.gmra.mxu0 %v140
    %v1851 = vpop.f32.mrf.mxu0
    %v1852 = vadd.f32 %v1812, %v1851
    %v1853 = vpop.f32.mrf.mxu0
    %v1854 = vpop.f32.mrf.mxu0
    %v1855 = vpop.f32.mrf.mxu0
    %1856 = vdwg.mxu0
    %1857 = vmatprep.subr.bf16.mxu0 0
    %1858 = vmatpush1.bf16.msra.mxu0 %v1080
    %1859 = vmatprep.subr.bf16.mxu0 0
    %1860 = vmatpush1.bf16.msra.mxu0 %v1079
    %1861 = vmatprep.subr.bf16.mxu0 0
    %1862 = vmatpush1.bf16.msra.mxu0 %v1078
    %1863 = vmatprep.subr.bf16.mxu0 0
    %1864 = vmatpush1.bf16.msra.mxu0 %v1077
    %1865 = vmatprep.subr.bf16.mxu0 0
    %1866 = vmatpush1.bf16.msra.mxu0 %v1076
    %1867 = vmatprep.subr.bf16.mxu0 0
    %1868 = vmatpush1.bf16.msra.mxu0 %v1075
    %1869 = vmatprep.subr.bf16.mxu0 0
    %1870 = vmatpush1.bf16.msra.mxu0 %v1074
    %1871 = vmatprep.subr.bf16.mxu0 0
    %1872 = vmatpush1.bf16.msra.mxu0 %v1073
    %1873 = vmatprep.subr.bf16.mxu0 0
    %1874 = vmatpush2.bf16.msra.mxu0 0
    %1875 = vmatprep.subr.bf16.mxu0 0
    %1876 = vmatpush2.bf16.msra.mxu0 0
    %1877 = vmatprep.subr.bf16.mxu0 0
    %1878 = vmatpush2.bf16.msra.mxu0 0
    %1879 = vmatprep.subr.bf16.mxu0 0
    %1880 = vmatpush2.bf16.msra.mxu0 0
    %1881 = vmatprep.subr.bf16.mxu0 0
    %1882 = vmatpush2.bf16.msra.mxu0 0
    %1883 = vmatprep.subr.bf16.mxu0 0
    %1884 = vmatpush2.bf16.msra.mxu0 0
    %1885 = vmatprep.subr.bf16.mxu0 0
    %1886 = vmatpush2.bf16.msra.mxu0 0
    %1887 = vmatprep.subr.bf16.mxu0 0
    %1888 = vmatpush2.bf16.msra.mxu0 %v1095
    %1889 = vmatprep.mubr.bf16.mxu0 %v1091
    %1890 = vmatmul.mubr.bf16.gmra.mxu0 %v142
    %v1891 = vpop.f32.mrf.mxu0
    %v1892 = vadd.f32 %v1852, %v1891
    %v1893 = vpop.f32.mrf.mxu0
    %v1894 = vpop.f32.mrf.mxu0
    %v1895 = vpop.f32.mrf.mxu0
    %1896 = vdwg.mxu0
    %v1897 = vmax.f32 %v1892, 0.0
    %v1898 = vld [vmem:[%s3] sm:$0xff]
    %v1899 = vld [vmem:[%s3 + $0x8] sm:$0xff]
    %v1900 = vld [vmem:[%s3 + $0x10] sm:$0xff]
    %v1901 = vld [vmem:[%s3 + $0x18] sm:$0xff]
    %v1902 = vld [vmem:[%s3 + $0x20] sm:$0xff]
    %v1903 = vld [vmem:[%s3 + $0x28] sm:$0xff]
    %v1904 = vld [vmem:[%s3 + $0x30] sm:$0xff]
    %v1905 = vld [vmem:[%s3 + $0x38] sm:$0xff]
    %v1906 = vld [vmem:[%s3 + $0x40] sm:$0xff]
    %v1907 = vld [vmem:[%s3 + $0x48] sm:$0xff]
    %v1908 = vld [vmem:[%s3 + $0x50] sm:$0xff]
    %v1909 = vld [vmem:[%s3 + $0x58] sm:$0xff]
    %v1910 = vld [vmem:[%s3 + $0x60] sm:$0xff]
    %v1911 = vld [vmem:[%s3 + $0x68] sm:$0xff]
    %v1912 = vld [vmem:[%s3 + $0x70] sm:$0xff]
    %v1913 = vld [vmem:[%s3 + $0x78] sm:$0xff]
    %v1914 = vld [vmem:[#allocation6] sm:$0x1]
    %v1916 = vlaneseq
    %v1917 = vshrl.u32 %v1916, 7
    %v1918 = vsub.s32 0, %v1917
    %v1919 = vrot.slane %v1914, %v1918
    %1921 = vmatprep.subr.mxu0 0.0
    %1922 = vmatpush1.msra.mxu0 %v1913
    %1923 = vmatprep.subr.mxu0 0.0
    %1924 = vmatpush1.msra.mxu0 %v1912
    %1925 = vmatprep.subr.mxu0 0.0
    %1926 = vmatpush1.msra.mxu0 %v1911
    %1927 = vmatprep.subr.mxu0 0.0
    %1928 = vmatpush1.msra.mxu0 %v1910
    %1929 = vmatprep.subr.mxu0 0.0
    %1930 = vmatpush1.msra.mxu0 %v1909
    %1931 = vmatprep.subr.mxu0 0.0
    %1932 = vmatpush1.msra.mxu0 %v1908
    %1933 = vmatprep.subr.mxu0 0.0
    %1934 = vmatpush1.msra.mxu0 %v1907
    %1935 = vmatprep.subr.mxu0 0.0
    %1936 = vmatpush1.msra.mxu0 %v1906
    %1937 = vmatprep.subr.mxu0 0.0
    %1938 = vmatpush1.msra.mxu0 %v1905
    %1939 = vmatprep.subr.mxu0 0.0
    %1940 = vmatpush1.msra.mxu0 %v1904
    %1941 = vmatprep.subr.mxu0 0.0
    %1942 = vmatpush1.msra.mxu0 %v1903
    %1943 = vmatprep.subr.mxu0 0.0
    %1944 = vmatpush1.msra.mxu0 %v1902
    %1945 = vmatprep.subr.mxu0 0.0
    %1946 = vmatpush1.msra.mxu0 %v1901
    %1947 = vmatprep.subr.mxu0 0.0
    %1948 = vmatpush1.msra.mxu0 %v1900
    %1949 = vmatprep.subr.mxu0 0.0
    %1950 = vmatpush1.msra.mxu0 %v1899
    %1951 = vmatprep.subr.mxu0 0.0
    %1952 = vmatpush1.msra.mxu0 %v1898
    %1953 = vmatprep.subr.mxu0 0.0
    %1954 = vmatpush2.msra.mxu0 0.0
    %1955 = vmatprep.subr.mxu0 0.0
    %1956 = vmatpush2.msra.mxu0 0.0
    %1957 = vmatprep.subr.mxu0 0.0
    %1958 = vmatpush2.msra.mxu0 0.0
    %1959 = vmatprep.subr.mxu0 0.0
    %1960 = vmatpush2.msra.mxu0 0.0
    %1961 = vmatprep.subr.mxu0 0.0
    %1962 = vmatpush2.msra.mxu0 0.0
    %1963 = vmatprep.subr.mxu0 0.0
    %1964 = vmatpush2.msra.mxu0 0.0
    %1965 = vmatprep.subr.mxu0 0.0
    %1966 = vmatpush2.msra.mxu0 0.0
    %1967 = vmatprep.subr.mxu0 0.0
    %1968 = vmatpush2.msra.mxu0 0.0
    %1969 = vmatprep.subr.mxu0 0.0
    %1970 = vmatpush2.msra.mxu0 0.0
    %1971 = vmatprep.subr.mxu0 0.0
    %1972 = vmatpush2.msra.mxu0 0.0
    %1973 = vmatprep.subr.mxu0 0.0
    %1974 = vmatpush2.msra.mxu0 0.0
    %1975 = vmatprep.subr.mxu0 0.0
    %1976 = vmatpush2.msra.mxu0 0.0
    %1977 = vmatprep.subr.mxu0 0.0
    %1978 = vmatpush2.msra.mxu0 0.0
    %1979 = vmatprep.subr.mxu0 0.0
    %1980 = vmatpush2.msra.mxu0 0.0
    %1981 = vmatprep.subr.mxu0 0.0
    %1982 = vmatpush2.msra.mxu0 0.0
    %1983 = vmatprep.subr.mxu0 0.0
    %1984 = vmatpush2.msra.mxu0 0.0
    %1985 = vmatprep.mubr.f32.mxu0 0.0
    %1986 = vmatmul.mubr.f32.gmra.mxu0 %v1897
    %v1987 = vpop.f32.mrf.mxu0
    %v1988 = vadd.f32 %v1919, %v1987
    %v1989 = vpop.f32.mrf.mxu0
    %1990 = vdwg.mxu0
    %v1991 = vmax.f32 %v1988, 0.0
    %v1992 = vld [vmem:[%s5] sm:$0xff]
    %v1993 = vld [vmem:[%s5 + $0x8] sm:$0xff]
    %v1994 = vld [vmem:[%s5 + $0x10] sm:$0xff]
    %v1995 = vld [vmem:[%s5 + $0x18] sm:$0xff]
    %v1996 = vld [vmem:[%s5 + $0x20] sm:$0xff]
    %v1997 = vld [vmem:[%s5 + $0x28] sm:$0xff]
    %v1998 = vld [vmem:[%s5 + $0x30] sm:$0xff]
    %v1999 = vld [vmem:[%s5 + $0x38] sm:$0xff]
    %v2000 = vld [vmem:[%s6] sm:$0x1]
    %v2002 = vlaneseq
    %v2003 = vshrl.u32 %v2002, 7
    %v2004 = vsub.s32 0, %v2003
    %v2005 = vrot.slane %v2000, %v2004
    %vm2007 = vcmask 523264
    %v2009 = vsel %vm2007, %v1991, 0
    %2011 = vmatprep.subr.mxu0 0.0
    %2012 = vmatpush1.msra.mxu0 0.0
    %2013 = vmatprep.subr.mxu0 0.0
    %2014 = vmatpush1.msra.mxu0 0.0
    %2015 = vmatprep.subr.mxu0 0.0
    %2016 = vmatpush1.msra.mxu0 0.0
    %2017 = vmatprep.subr.mxu0 0.0
    %2018 = vmatpush1.msra.mxu0 0.0
    %2019 = vmatprep.subr.mxu0 0.0
    %2020 = vmatpush1.msra.mxu0 0.0
    %2021 = vmatprep.subr.mxu0 0.0
    %2022 = vmatpush1.msra.mxu0 0.0
    %2023 = vmatprep.subr.mxu0 0.0
    %2024 = vmatpush1.msra.mxu0 0.0
    %2025 = vmatprep.subr.mxu0 0.0
    %2026 = vmatpush1.msra.mxu0 0.0
    %2027 = vmatprep.subr.mxu0 0.0
    %2028 = vmatpush1.msra.mxu0 %v1999
    %2029 = vmatprep.subr.mxu0 0.0
    %2030 = vmatpush1.msra.mxu0 %v1998
    %2031 = vmatprep.subr.mxu0 0.0
    %2032 = vmatpush1.msra.mxu0 %v1997
    %2033 = vmatprep.subr.mxu0 0.0
    %2034 = vmatpush1.msra.mxu0 %v1996
    %2035 = vmatprep.subr.mxu0 0.0
    %2036 = vmatpush1.msra.mxu0 %v1995
    %2037 = vmatprep.subr.mxu0 0.0
    %2038 = vmatpush1.msra.mxu0 %v1994
    %2039 = vmatprep.subr.mxu0 0.0
    %2040 = vmatpush1.msra.mxu0 %v1993
    %2041 = vmatprep.subr.mxu0 0.0
    %2042 = vmatpush1.msra.mxu0 %v1992
    %2043 = vmatprep.subr.mxu0 0.0
    %2044 = vmatpush2.msra.mxu0 0.0
    %2045 = vmatprep.subr.mxu0 0.0
    %2046 = vmatpush2.msra.mxu0 0.0
    %2047 = vmatprep.subr.mxu0 0.0
    %2048 = vmatpush2.msra.mxu0 0.0
    %2049 = vmatprep.subr.mxu0 0.0
    %2050 = vmatpush2.msra.mxu0 0.0
    %2051 = vmatprep.subr.mxu0 0.0
    %2052 = vmatpush2.msra.mxu0 0.0
    %2053 = vmatprep.subr.mxu0 0.0
    %2054 = vmatpush2.msra.mxu0 0.0
    %2055 = vmatprep.subr.mxu0 0.0
    %2056 = vmatpush2.msra.mxu0 0.0
    %2057 = vmatprep.subr.mxu0 0.0
    %2058 = vmatpush2.msra.mxu0 0.0
    %2059 = vmatprep.subr.mxu0 0.0
    %2060 = vmatpush2.msra.mxu0 0.0
    %2061 = vmatprep.subr.mxu0 0.0
    %2062 = vmatpush2.msra.mxu0 0.0
    %2063 = vmatprep.subr.mxu0 0.0
    %2064 = vmatpush2.msra.mxu0 0.0
    %2065 = vmatprep.subr.mxu0 0.0
    %2066 = vmatpush2.msra.mxu0 0.0
    %2067 = vmatprep.subr.mxu0 0.0
    %2068 = vmatpush2.msra.mxu0 0.0
    %2069 = vmatprep.subr.mxu0 0.0
    %2070 = vmatpush2.msra.mxu0 0.0
    %2071 = vmatprep.subr.mxu0 0.0
    %2072 = vmatpush2.msra.mxu0 0.0
    %2073 = vmatprep.subr.mxu0 0.0
    %2074 = vmatpush2.msra.mxu0 0.0
    %2075 = vmatprep.mubr.f32.mxu0 0.0
    %2076 = vmatmul.mubr.f32.gmra.mxu0 %v2009
    %v2077 = vpop.f32.mrf.mxu0
    %v2078 = vadd.f32 %v2005, %v2077
    %v2079 = vpop.f32.mrf.mxu0
    %2080 = vdwg.mxu0
    %2081 = vst [vmem:[%s7] sm:$0xff] %v2078
    // Predicated region
    $region42: #{mlp_forward.1} parent=1 // pred_check
      _
    $region43: #{mlp_forward.1} parent=1 // pred_check_branch
      %2083 = sbr.rel (0) target = $region45
    $region44: #{mlp_forward.1} parent=1 // pred_region
      _
    $region45: #{mlp_forward.1} parent=1 // pred_fallthru
      _
    // Predicated region
    $region46: #{mlp_forward.1} parent=1 // pred_check
      _
    $region47: #{mlp_forward.1} parent=1 // pred_check_branch
      %2085 = sbr.rel (0) target = $region49
    $region48: #{mlp_forward.1} parent=1 // pred_region
      _
    $region49: #{mlp_forward.1} parent=1 // pred_fallthru
      _
    %2086 = vsyncpa [#allocation3], 1
    %2087 = vsyncpa [#allocation5], 1

</llo_original>
